<compile_context>
chip_gen: v7x
topology: tpu7x:2x2x1
jax: 0.10.0
libtpu: 0.0.40
codegen_flags: <defaults>
</compile_context>

<pallas_src>
import math

import jax
import jax.numpy as jnp
from jax.experimental import pallas as pl
from jax.experimental.pallas import tpu as pltpu


def _make_attention_kernel(block_b, n_c, n_x, context_dim, query_dim, heads, dim_head):
    """One grid step == `block_b` batch elements; all heads handled inside."""

    def kernel(ctx_ref, x_ref, wq_ref, wk_ref, wv_ref, wo_ref, o_ref):
        # Flatten the batch block into the row (M) dimension so the
        # projection matmuls present M = block_b * N to the MXU.
        ctx = ctx_ref[...].astype(jnp.bfloat16).reshape(block_b * n_c, context_dim)
        xin = x_ref[...].astype(jnp.bfloat16).reshape(block_b * n_x, query_dim)

        # f32 output-projection accumulator (single lane-dense store at end).
        acc = jnp.zeros((block_b * n_c, query_dim), dtype=jnp.float32)

        # Per-head attention, statically unrolled (heads is a small
        # compile-time constant). Head split is on the weight refs only.
        for h in range(heads):
            wq_h = wq_ref[h]                       # (context_dim, dh) bf16, static slice
            wk_h = wk_ref[h]                       # (query_dim,  dh)
            wv_h = wv_ref[h]                       # (query_dim,  dh)
            wo_h = wo_ref[h]                       # (dh, query_dim)

            q = jnp.dot(ctx, wq_h, preferred_element_type=jnp.float32)   # (Bt*N_c, dh)
            k = jnp.dot(xin, wk_h, preferred_element_type=jnp.float32)   # (Bt*N_x, dh)
            v = jnp.dot(xin, wv_h, preferred_element_type=jnp.float32)   # (Bt*N_x, dh)

            q3 = q.astype(jnp.bfloat16).reshape(block_b, n_c, dim_head)
            k3 = k.astype(jnp.bfloat16).reshape(block_b, n_x, dim_head)
            v3 = v.astype(jnp.bfloat16).reshape(block_b, n_x, dim_head)

            # Batched (over Bt) attention dots; contract the shared last dim
            # directly -> no transpose relayout. Scale is pre-folded into wq.
            s = jnp.einsum("bqd,bkd->bqk", q3, k3,
                           preferred_element_type=jnp.float32)           # (Bt, N_c, N_x)

            m = jnp.max(s, axis=-1, keepdims=True)
            p = jnp.exp(s - m)
            p = p * pl.reciprocal(jnp.sum(p, axis=-1, keepdims=True), approx=True)

            oh = jnp.einsum("bqk,bkd->bqd", p.astype(jnp.bfloat16), v3,
                            preferred_element_type=jnp.float32)          # (Bt, N_c, dh)

            # Per-head output-projection accumulation: no lane concat, only
            # one head's activations live at a time.
            acc = acc + jnp.dot(
                oh.reshape(block_b * n_c, dim_head).astype(jnp.bfloat16),
                wo_h, preferred_element_type=jnp.float32)                # (Bt*N_c, Dq)

        o_ref[...] = acc.reshape(block_b, n_c, query_dim).astype(o_ref.dtype)

    return kernel


def attention_pallas(x, context, wq_t, wkv_t, wo_t, *, heads, dim_head, block_b=8):
    """Pallas implementation of the Attention module forward pass.

    x:       (B, N_x, query_dim)
    context: (B, N_c, context_dim)
    wq_t:    (context_dim, inner_dim)      == to_q.weight.T
    wkv_t:   (query_dim,  2 * inner_dim)   == to_kv.weight.T
    wo_t:    (inner_dim,  query_dim)       == to_out.weight.T
    """
    B, N_x, query_dim = x.shape
    _, N_c, context_dim = context.shape
    inner_dim = heads * dim_head
    scale = dim_head ** (-0.5)

    # Largest divisor of B not exceeding block_b -> no partial batch blocks.
    bt = max(d for d in range(1, min(B, block_b) + 1) if B % d == 0)

    # Head-major weights so the head split in the kernel is a static ref
    # index (free); softmax scale folded into wq; all weights bf16 for MXU.
    wq = (wq_t * scale).reshape(context_dim, heads, dim_head)
    wq = jnp.transpose(wq, (1, 0, 2)).astype(jnp.bfloat16)              # (H, C,  dh)
    wk = wkv_t[:, :inner_dim].reshape(query_dim, heads, dim_head)
    wk = jnp.transpose(wk, (1, 0, 2)).astype(jnp.bfloat16)              # (H, Dq, dh)
    wv = wkv_t[:, inner_dim:].reshape(query_dim, heads, dim_head)
    wv = jnp.transpose(wv, (1, 0, 2)).astype(jnp.bfloat16)              # (H, Dq, dh)
    wo = wo_t.reshape(heads, dim_head, query_dim).astype(jnp.bfloat16)  # (H, dh, Dq)

    kernel = _make_attention_kernel(bt, N_c, N_x, context_dim, query_dim,
                                    heads, dim_head)

    out = pl.pallas_call(
        kernel,
        out_shape=jax.ShapeDtypeStruct((B, N_c, query_dim), x.dtype),
        grid_spec=pltpu.PrefetchScalarGridSpec(
            num_scalar_prefetch=0,
            grid=(B // bt,),
            in_specs=[
                pl.BlockSpec((bt, N_c, context_dim), lambda b: (b, 0, 0)),     # context
                pl.BlockSpec((bt, N_x, query_dim), lambda b: (b, 0, 0)),       # x
                pl.BlockSpec((heads, context_dim, dim_head), lambda b: (0, 0, 0)),  # wq (scaled)
                pl.BlockSpec((heads, query_dim, dim_head), lambda b: (0, 0, 0)),    # wk
                pl.BlockSpec((heads, query_dim, dim_head), lambda b: (0, 0, 0)),    # wv
                pl.BlockSpec((heads, dim_head, query_dim), lambda b: (0, 0, 0)),    # wo
            ],
            out_specs=pl.BlockSpec((bt, N_c, query_dim), lambda b: (b, 0, 0)),
        ),
        compiler_params=pltpu.CompilerParams(
            dimension_semantics=("parallel",),
        ),
    )(context, x, wq, wk, wv, wo)
    return out


def attention_reference(x, context, wq_t, wkv_t, wo_t, *, heads, dim_head):
    """Pure-JAX f32 reference matching the PyTorch forward semantics."""
    B, N_x, _ = x.shape
    _, N_c, _ = context.shape
    inner_dim = heads * dim_head
    scale = dim_head ** (-0.5)

    q = context @ wq_t                       # (B, N_c, inner_dim)
    kv = x @ wkv_t                           # (B, N_x, 2*inner_dim)
    k, v = kv[..., :inner_dim], kv[..., inner_dim:]

    def split(t, n):
        return t.reshape(B, n, heads, dim_head).transpose(0, 2, 1, 3)  # (B, H, n, dh)

    qh, kh, vh = split(q, N_c), split(k, N_x), split(v, N_x)
    s = jnp.einsum("bhqd,bhkd->bhqk", qh, kh) * scale
    p = jax.nn.softmax(s, axis=-1)
    o = jnp.einsum("bhqk,bhkd->bhqd", p, vh)             # (B, H, N_c, dh)
    o = o.transpose(0, 2, 1, 3).reshape(B, N_c, inner_dim)
    return o @ wo_t


if __name__ == "__main__":
    # Small config (module default is heads=8, dim_head=64 -> inner_dim=512);
    # chosen so inner_dim == 128 stays lane-dense.
    query_dim = 32
    context_dim = 64
    heads = 4
    dim_head = 32
    inner_dim = heads * dim_head

    B, N_x, N_c = 2, 16, 8

    key = jax.random.PRNGKey(0)
    k_x, k_c, k_q, k_kv, k_o = jax.random.split(key, 5)

    x = jax.random.normal(k_x, (B, N_x, query_dim), dtype=jnp.float32)
    context = jax.random.normal(k_c, (B, N_c, context_dim), dtype=jnp.float32)

    # Deterministic synthetic weights (PyTorch Linear: y = x @ W.T, bias=False).
    wq_t = jax.random.normal(k_q, (context_dim, inner_dim), dtype=jnp.float32) / math.sqrt(context_dim)
    wkv_t = jax.random.normal(k_kv, (query_dim, 2 * inner_dim), dtype=jnp.float32) / math.sqrt(query_dim)
    wo_t = jax.random.normal(k_o, (inner_dim, query_dim), dtype=jnp.float32) / math.sqrt(inner_dim)

    out = attention_pallas(x, context, wq_t, wkv_t, wo_t, heads=heads, dim_head=dim_head)
    out = jax.block_until_ready(out)

    ref = attention_reference(x, context, wq_t, wkv_t, wo_t, heads=heads, dim_head=dim_head)
    assert out.shape == (B, N_c, query_dim)
    # bf16 MXU operands (f32 accumulation) -> looser tolerance than pure f32.
    assert jnp.allclose(out, ref, atol=5e-2, rtol=5e-2), "Pallas output mismatch vs reference"

    print("KERNEL_OK")
</pallas_src>

<mosaic_0001>
module attributes {stable_mosaic.version = 11 : i64} {
  func.func @kernel(%arg0: i32, %arg1: memref<2x8x64xf32, #tpu.memory_space<vmem>>, %arg2: memref<2x16x32xf32, #tpu.memory_space<vmem>>, %arg3: memref<4x64x32xbf16, #tpu.memory_space<vmem>>, %arg4: memref<4x32x32xbf16, #tpu.memory_space<vmem>>, %arg5: memref<4x32x32xbf16, #tpu.memory_space<vmem>>, %arg6: memref<4x32x32xbf16, #tpu.memory_space<vmem>>, %arg7: memref<2x8x32xf32, #tpu.memory_space<vmem>>) attributes {dimension_semantics = [#tpu.dimension_semantics<parallel>], iteration_bounds = array<i64: 1>, scalar_prefetch = 0 : i64, scratch_operands = 0 : i64, tpu.core_type = #tpu.core_type<tc>, window_params = [{transform_indices = @transform_0, window_bounds = array<i64: 2, 8, 64>}, {transform_indices = @transform_1, window_bounds = array<i64: 2, 16, 32>}, {pipeline_mode = #tpu.pipeline_mode<synchronous>, transform_indices = @transform_2, window_bounds = array<i64: 4, 64, 32>}, {pipeline_mode = #tpu.pipeline_mode<synchronous>, transform_indices = @transform_3, window_bounds = array<i64: 4, 32, 32>}, {pipeline_mode = #tpu.pipeline_mode<synchronous>, transform_indices = @transform_4, window_bounds = array<i64: 4, 32, 32>}, {pipeline_mode = #tpu.pipeline_mode<synchronous>, transform_indices = @transform_5, window_bounds = array<i64: 4, 32, 32>}, {transform_indices = @transform_6, window_bounds = array<i64: 2, 8, 32>}]} {
    %c0 = arith.constant 0 : index
    %c0_0 = arith.constant 0 : index
    %c0_1 = arith.constant 0 : index
    %0 = vector.load %arg1[%c0, %c0_0, %c0_1] : memref<2x8x64xf32, #tpu.memory_space<vmem>>, vector<2x8x64xf32>
    %1 = arith.truncf %0 : vector<2x8x64xf32> to vector<2x8x64xbf16>
    %2 = vector.shape_cast %1 : vector<2x8x64xbf16> to vector<16x64xbf16>
    %c0_2 = arith.constant 0 : index
    %c0_3 = arith.constant 0 : index
    %c0_4 = arith.constant 0 : index
    %3 = vector.load %arg2[%c0_2, %c0_3, %c0_4] : memref<2x16x32xf32, #tpu.memory_space<vmem>>, vector<2x16x32xf32>
    %4 = arith.truncf %3 : vector<2x16x32xf32> to vector<2x16x32xbf16>
    %5 = vector.shape_cast %4 : vector<2x16x32xbf16> to vector<32x32xbf16>
    %cst = arith.constant 0.000000e+00 : f32
    %6 = vector.broadcast %cst : f32 to vector<16x32xf32>
    %c0_5 = arith.constant 0 : index
    %c0_6 = arith.constant 0 : index
    %c0_7 = arith.constant 0 : index
    %7 = vector.load %arg3[%c0_5, %c0_6, %c0_7] : memref<4x64x32xbf16, #tpu.memory_space<vmem>>, vector<1x64x32xbf16>
    %8 = vector.shape_cast %7 : vector<1x64x32xbf16> to vector<64x32xbf16>
    %c0_8 = arith.constant 0 : index
    %c0_9 = arith.constant 0 : index
    %c0_10 = arith.constant 0 : index
    %9 = vector.load %arg4[%c0_8, %c0_9, %c0_10] : memref<4x32x32xbf16, #tpu.memory_space<vmem>>, vector<1x32x32xbf16>
    %10 = vector.shape_cast %9 : vector<1x32x32xbf16> to vector<32x32xbf16>
    %c0_11 = arith.constant 0 : index
    %c0_12 = arith.constant 0 : index
    %c0_13 = arith.constant 0 : index
    %11 = vector.load %arg5[%c0_11, %c0_12, %c0_13] : memref<4x32x32xbf16, #tpu.memory_space<vmem>>, vector<1x32x32xbf16>
    %12 = vector.shape_cast %11 : vector<1x32x32xbf16> to vector<32x32xbf16>
    %c0_14 = arith.constant 0 : index
    %c0_15 = arith.constant 0 : index
    %c0_16 = arith.constant 0 : index
    %13 = vector.load %arg6[%c0_14, %c0_15, %c0_16] : memref<4x32x32xbf16, #tpu.memory_space<vmem>>, vector<1x32x32xbf16>
    %14 = vector.shape_cast %13 : vector<1x32x32xbf16> to vector<32x32xbf16>
    %cst_17 = arith.constant dense<0.000000e+00> : vector<16x32xf32>
    %15 = tpu.matmul %2, %8, %cst_17 {dimension_numbers = #tpu.dot_dimension_numbers<[1], [0], [0], [1], [0, 0, 1, 1], [], []>} : vector<16x64xbf16>, vector<64x32xbf16>, vector<16x32xf32> -> vector<16x32xf32>
    %cst_18 = arith.constant dense<0.000000e+00> : vector<32x32xf32>
    %16 = tpu.matmul %5, %10, %cst_18 {dimension_numbers = #tpu.dot_dimension_numbers<[1], [0], [0], [1], [0, 0, 1, 1], [], []>} : vector<32x32xbf16>, vector<32x32xbf16>, vector<32x32xf32> -> vector<32x32xf32>
    %cst_19 = arith.constant dense<0.000000e+00> : vector<32x32xf32>
    %17 = tpu.matmul %5, %12, %cst_19 {dimension_numbers = #tpu.dot_dimension_numbers<[1], [0], [0], [1], [0, 0, 1, 1], [], []>} : vector<32x32xbf16>, vector<32x32xbf16>, vector<32x32xf32> -> vector<32x32xf32>
    %18 = arith.truncf %15 : vector<16x32xf32> to vector<16x32xbf16>
    %19 = vector.shape_cast %18 : vector<16x32xbf16> to vector<2x8x32xbf16>
    %20 = arith.truncf %16 : vector<32x32xf32> to vector<32x32xbf16>
    %21 = vector.shape_cast %20 : vector<32x32xbf16> to vector<2x16x32xbf16>
    %22 = arith.truncf %17 : vector<32x32xf32> to vector<32x32xbf16>
    %23 = vector.shape_cast %22 : vector<32x32xbf16> to vector<2x16x32xbf16>
    "tpu.trace_start"() <{level = 10 : i32, message = "bqd,bkd->bqk"}> : () -> ()
    %cst_20 = arith.constant dense<0.000000e+00> : vector<2x8x16xf32>
    %24 = tpu.matmul %19, %21, %cst_20 {dimension_numbers = #tpu.dot_dimension_numbers<[2], [2], [1], [1], [0, 0, 0, 1, 1, 1], [0], [0]>} : vector<2x8x32xbf16>, vector<2x16x32xbf16>, vector<2x8x16xf32> -> vector<2x8x16xf32>
    "tpu.trace_stop"() : () -> ()
    %cst_21 = arith.constant dense<0xFF800000> : vector<2x8xf32>
    %25 = vector.multi_reduction <maximumf>, %24, %cst_21 [2] : vector<2x8x16xf32> to vector<2x8xf32>
    %26 = vector.shape_cast %25 : vector<2x8xf32> to vector<2x8x1xf32>
    %27 = vector.broadcast %26 : vector<2x8x1xf32> to vector<2x8x16xf32>
    %28 = arith.subf %24, %27 : vector<2x8x16xf32>
    %29 = math.exp %28 : vector<2x8x16xf32>
    %cst_22 = arith.constant dense<0.000000e+00> : vector<2x8xf32>
    %30 = vector.multi_reduction <add>, %29, %cst_22 [2] : vector<2x8x16xf32> to vector<2x8xf32>
    %31 = vector.shape_cast %30 : vector<2x8xf32> to vector<2x8x1xf32>
    %32 = tpu.reciprocal %31 {approx = true} : vector<2x8x1xf32> -> vector<2x8x1xf32>
    %33 = vector.broadcast %32 : vector<2x8x1xf32> to vector<2x8x16xf32>
    %34 = arith.mulf %29, %33 : vector<2x8x16xf32>
    %35 = arith.truncf %34 : vector<2x8x16xf32> to vector<2x8x16xbf16>
    "tpu.trace_start"() <{level = 10 : i32, message = "bqk,bkd->bqd"}> : () -> ()
    %cst_23 = arith.constant dense<0.000000e+00> : vector<2x8x32xf32>
    %36 = tpu.matmul %35, %23, %cst_23 {dimension_numbers = #tpu.dot_dimension_numbers<[2], [1], [1], [2], [0, 0, 0, 1, 1, 2], [0], [0]>} : vector<2x8x16xbf16>, vector<2x16x32xbf16>, vector<2x8x32xf32> -> vector<2x8x32xf32>
    "tpu.trace_stop"() : () -> ()
    %37 = vector.shape_cast %36 : vector<2x8x32xf32> to vector<16x32xf32>
    %38 = arith.truncf %37 : vector<16x32xf32> to vector<16x32xbf16>
    %cst_24 = arith.constant dense<0.000000e+00> : vector<16x32xf32>
    %39 = tpu.matmul %38, %14, %cst_24 {dimension_numbers = #tpu.dot_dimension_numbers<[1], [0], [0], [1], [0, 0, 1, 1], [], []>} : vector<16x32xbf16>, vector<32x32xbf16>, vector<16x32xf32> -> vector<16x32xf32>
    %40 = arith.addf %6, %39 : vector<16x32xf32>
    %c1 = arith.constant 1 : index
    %c0_25 = arith.constant 0 : index
    %c0_26 = arith.constant 0 : index
    %41 = vector.load %arg3[%c1, %c0_25, %c0_26] : memref<4x64x32xbf16, #tpu.memory_space<vmem>>, vector<1x64x32xbf16>
    %42 = vector.shape_cast %41 : vector<1x64x32xbf16> to vector<64x32xbf16>
    %c1_27 = arith.constant 1 : index
    %c0_28 = arith.constant 0 : index
    %c0_29 = arith.constant 0 : index
    %43 = vector.load %arg4[%c1_27, %c0_28, %c0_29] : memref<4x32x32xbf16, #tpu.memory_space<vmem>>, vector<1x32x32xbf16>
    %44 = vector.shape_cast %43 : vector<1x32x32xbf16> to vector<32x32xbf16>
    %c1_30 = arith.constant 1 : index
    %c0_31 = arith.constant 0 : index
    %c0_32 = arith.constant 0 : index
    %45 = vector.load %arg5[%c1_30, %c0_31, %c0_32] : memref<4x32x32xbf16, #tpu.memory_space<vmem>>, vector<1x32x32xbf16>
    %46 = vector.shape_cast %45 : vector<1x32x32xbf16> to vector<32x32xbf16>
    %c1_33 = arith.constant 1 : index
    %c0_34 = arith.constant 0 : index
    %c0_35 = arith.constant 0 : index
    %47 = vector.load %arg6[%c1_33, %c0_34, %c0_35] : memref<4x32x32xbf16, #tpu.memory_space<vmem>>, vector<1x32x32xbf16>
    %48 = vector.shape_cast %47 : vector<1x32x32xbf16> to vector<32x32xbf16>
    %cst_36 = arith.constant dense<0.000000e+00> : vector<16x32xf32>
    %49 = tpu.matmul %2, %42, %cst_36 {dimension_numbers = #tpu.dot_dimension_numbers<[1], [0], [0], [1], [0, 0, 1, 1], [], []>} : vector<16x64xbf16>, vector<64x32xbf16>, vector<16x32xf32> -> vector<16x32xf32>
    %cst_37 = arith.constant dense<0.000000e+00> : vector<32x32xf32>
    %50 = tpu.matmul %5, %44, %cst_37 {dimension_numbers = #tpu.dot_dimension_numbers<[1], [0], [0], [1], [0, 0, 1, 1], [], []>} : vector<32x32xbf16>, vector<32x32xbf16>, vector<32x32xf32> -> vector<32x32xf32>
    %cst_38 = arith.constant dense<0.000000e+00> : vector<32x32xf32>
    %51 = tpu.matmul %5, %46, %cst_38 {dimension_numbers = #tpu.dot_dimension_numbers<[1], [0], [0], [1], [0, 0, 1, 1], [], []>} : vector<32x32xbf16>, vector<32x32xbf16>, vector<32x32xf32> -> vector<32x32xf32>
    %52 = arith.truncf %49 : vector<16x32xf32> to vector<16x32xbf16>
    %53 = vector.shape_cast %52 : vector<16x32xbf16> to vector<2x8x32xbf16>
    %54 = arith.truncf %50 : vector<32x32xf32> to vector<32x32xbf16>
    %55 = vector.shape_cast %54 : vector<32x32xbf16> to vector<2x16x32xbf16>
    %56 = arith.truncf %51 : vector<32x32xf32> to vector<32x32xbf16>
    %57 = vector.shape_cast %56 : vector<32x32xbf16> to vector<2x16x32xbf16>
    "tpu.trace_start"() <{level = 10 : i32, message = "bqd,bkd->bqk"}> : () -> ()
    %cst_39 = arith.constant dense<0.000000e+00> : vector<2x8x16xf32>
    %58 = tpu.matmul %53, %55, %cst_39 {dimension_numbers = #tpu.dot_dimension_numbers<[2], [2], [1], [1], [0, 0, 0, 1, 1, 1], [0], [0]>} : vector<2x8x32xbf16>, vector<2x16x32xbf16>, vector<2x8x16xf32> -> vector<2x8x16xf32>
    "tpu.trace_stop"() : () -> ()
    %cst_40 = arith.constant dense<0xFF800000> : vector<2x8xf32>
    %59 = vector.multi_reduction <maximumf>, %58, %cst_40 [2] : vector<2x8x16xf32> to vector<2x8xf32>
    %60 = vector.shape_cast %59 : vector<2x8xf32> to vector<2x8x1xf32>
    %61 = vector.broadcast %60 : vector<2x8x1xf32> to vector<2x8x16xf32>
    %62 = arith.subf %58, %61 : vector<2x8x16xf32>
    %63 = math.exp %62 : vector<2x8x16xf32>
    %cst_41 = arith.constant dense<0.000000e+00> : vector<2x8xf32>
    %64 = vector.multi_reduction <add>, %63, %cst_41 [2] : vector<2x8x16xf32> to vector<2x8xf32>
    %65 = vector.shape_cast %64 : vector<2x8xf32> to vector<2x8x1xf32>
    %66 = tpu.reciprocal %65 {approx = true} : vector<2x8x1xf32> -> vector<2x8x1xf32>
    %67 = vector.broadcast %66 : vector<2x8x1xf32> to vector<2x8x16xf32>
    %68 = arith.mulf %63, %67 : vector<2x8x16xf32>
    %69 = arith.truncf %68 : vector<2x8x16xf32> to vector<2x8x16xbf16>
    "tpu.trace_start"() <{level = 10 : i32, message = "bqk,bkd->bqd"}> : () -> ()
    %cst_42 = arith.constant dense<0.000000e+00> : vector<2x8x32xf32>
    %70 = tpu.matmul %69, %57, %cst_42 {dimension_numbers = #tpu.dot_dimension_numbers<[2], [1], [1], [2], [0, 0, 0, 1, 1, 2], [0], [0]>} : vector<2x8x16xbf16>, vector<2x16x32xbf16>, vector<2x8x32xf32> -> vector<2x8x32xf32>
    "tpu.trace_stop"() : () -> ()
    %71 = vector.shape_cast %70 : vector<2x8x32xf32> to vector<16x32xf32>
    %72 = arith.truncf %71 : vector<16x32xf32> to vector<16x32xbf16>
    %cst_43 = arith.constant dense<0.000000e+00> : vector<16x32xf32>
    %73 = tpu.matmul %72, %48, %cst_43 {dimension_numbers = #tpu.dot_dimension_numbers<[1], [0], [0], [1], [0, 0, 1, 1], [], []>} : vector<16x32xbf16>, vector<32x32xbf16>, vector<16x32xf32> -> vector<16x32xf32>
    %74 = arith.addf %40, %73 : vector<16x32xf32>
    %c2 = arith.constant 2 : index
    %c0_44 = arith.constant 0 : index
    %c0_45 = arith.constant 0 : index
    %75 = vector.load %arg3[%c2, %c0_44, %c0_45] : memref<4x64x32xbf16, #tpu.memory_space<vmem>>, vector<1x64x32xbf16>
    %76 = vector.shape_cast %75 : vector<1x64x32xbf16> to vector<64x32xbf16>
    %c2_46 = arith.constant 2 : index
    %c0_47 = arith.constant 0 : index
    %c0_48 = arith.constant 0 : index
    %77 = vector.load %arg4[%c2_46, %c0_47, %c0_48] : memref<4x32x32xbf16, #tpu.memory_space<vmem>>, vector<1x32x32xbf16>
    %78 = vector.shape_cast %77 : vector<1x32x32xbf16> to vector<32x32xbf16>
    %c2_49 = arith.constant 2 : index
    %c0_50 = arith.constant 0 : index
    %c0_51 = arith.constant 0 : index
    %79 = vector.load %arg5[%c2_49, %c0_50, %c0_51] : memref<4x32x32xbf16, #tpu.memory_space<vmem>>, vector<1x32x32xbf16>
    %80 = vector.shape_cast %79 : vector<1x32x32xbf16> to vector<32x32xbf16>
    %c2_52 = arith.constant 2 : index
    %c0_53 = arith.constant 0 : index
    %c0_54 = arith.constant 0 : index
    %81 = vector.load %arg6[%c2_52, %c0_53, %c0_54] : memref<4x32x32xbf16, #tpu.memory_space<vmem>>, vector<1x32x32xbf16>
    %82 = vector.shape_cast %81 : vector<1x32x32xbf16> to vector<32x32xbf16>
    %cst_55 = arith.constant dense<0.000000e+00> : vector<16x32xf32>
    %83 = tpu.matmul %2, %76, %cst_55 {dimension_numbers = #tpu.dot_dimension_numbers<[1], [0], [0], [1], [0, 0, 1, 1], [], []>} : vector<16x64xbf16>, vector<64x32xbf16>, vector<16x32xf32> -> vector<16x32xf32>
    %cst_56 = arith.constant dense<0.000000e+00> : vector<32x32xf32>
    %84 = tpu.matmul %5, %78, %cst_56 {dimension_numbers = #tpu.dot_dimension_numbers<[1], [0], [0], [1], [0, 0, 1, 1], [], []>} : vector<32x32xbf16>, vector<32x32xbf16>, vector<32x32xf32> -> vector<32x32xf32>
    %cst_57 = arith.constant dense<0.000000e+00> : vector<32x32xf32>
    %85 = tpu.matmul %5, %80, %cst_57 {dimension_numbers = #tpu.dot_dimension_numbers<[1], [0], [0], [1], [0, 0, 1, 1], [], []>} : vector<32x32xbf16>, vector<32x32xbf16>, vector<32x32xf32> -> vector<32x32xf32>
    %86 = arith.truncf %83 : vector<16x32xf32> to vector<16x32xbf16>
    %87 = vector.shape_cast %86 : vector<16x32xbf16> to vector<2x8x32xbf16>
    %88 = arith.truncf %84 : vector<32x32xf32> to vector<32x32xbf16>
    %89 = vector.shape_cast %88 : vector<32x32xbf16> to vector<2x16x32xbf16>
    %90 = arith.truncf %85 : vector<32x32xf32> to vector<32x32xbf16>
    %91 = vector.shape_cast %90 : vector<32x32xbf16> to vector<2x16x32xbf16>
    "tpu.trace_start"() <{level = 10 : i32, message = "bqd,bkd->bqk"}> : () -> ()
    %cst_58 = arith.constant dense<0.000000e+00> : vector<2x8x16xf32>
    %92 = tpu.matmul %87, %89, %cst_58 {dimension_numbers = #tpu.dot_dimension_numbers<[2], [2], [1], [1], [0, 0, 0, 1, 1, 1], [0], [0]>} : vector<2x8x32xbf16>, vector<2x16x32xbf16>, vector<2x8x16xf32> -> vector<2x8x16xf32>
    "tpu.trace_stop"() : () -> ()
    %cst_59 = arith.constant dense<0xFF800000> : vector<2x8xf32>
    %93 = vector.multi_reduction <maximumf>, %92, %cst_59 [2] : vector<2x8x16xf32> to vector<2x8xf32>
    %94 = vector.shape_cast %93 : vector<2x8xf32> to vector<2x8x1xf32>
    %95 = vector.broadcast %94 : vector<2x8x1xf32> to vector<2x8x16xf32>
    %96 = arith.subf %92, %95 : vector<2x8x16xf32>
    %97 = math.exp %96 : vector<2x8x16xf32>
    %cst_60 = arith.constant dense<0.000000e+00> : vector<2x8xf32>
    %98 = vector.multi_reduction <add>, %97, %cst_60 [2] : vector<2x8x16xf32> to vector<2x8xf32>
    %99 = vector.shape_cast %98 : vector<2x8xf32> to vector<2x8x1xf32>
    %100 = tpu.reciprocal %99 {approx = true} : vector<2x8x1xf32> -> vector<2x8x1xf32>
    %101 = vector.broadcast %100 : vector<2x8x1xf32> to vector<2x8x16xf32>
    %102 = arith.mulf %97, %101 : vector<2x8x16xf32>
    %103 = arith.truncf %102 : vector<2x8x16xf32> to vector<2x8x16xbf16>
    "tpu.trace_start"() <{level = 10 : i32, message = "bqk,bkd->bqd"}> : () -> ()
    %cst_61 = arith.constant dense<0.000000e+00> : vector<2x8x32xf32>
    %104 = tpu.matmul %103, %91, %cst_61 {dimension_numbers = #tpu.dot_dimension_numbers<[2], [1], [1], [2], [0, 0, 0, 1, 1, 2], [0], [0]>} : vector<2x8x16xbf16>, vector<2x16x32xbf16>, vector<2x8x32xf32> -> vector<2x8x32xf32>
    "tpu.trace_stop"() : () -> ()
    %105 = vector.shape_cast %104 : vector<2x8x32xf32> to vector<16x32xf32>
    %106 = arith.truncf %105 : vector<16x32xf32> to vector<16x32xbf16>
    %cst_62 = arith.constant dense<0.000000e+00> : vector<16x32xf32>
    %107 = tpu.matmul %106, %82, %cst_62 {dimension_numbers = #tpu.dot_dimension_numbers<[1], [0], [0], [1], [0, 0, 1, 1], [], []>} : vector<16x32xbf16>, vector<32x32xbf16>, vector<16x32xf32> -> vector<16x32xf32>
    %108 = arith.addf %74, %107 : vector<16x32xf32>
    %c3 = arith.constant 3 : index
    %c0_63 = arith.constant 0 : index
    %c0_64 = arith.constant 0 : index
    %109 = vector.load %arg3[%c3, %c0_63, %c0_64] : memref<4x64x32xbf16, #tpu.memory_space<vmem>>, vector<1x64x32xbf16>
    %110 = vector.shape_cast %109 : vector<1x64x32xbf16> to vector<64x32xbf16>
    %c3_65 = arith.constant 3 : index
    %c0_66 = arith.constant 0 : index
    %c0_67 = arith.constant 0 : index
    %111 = vector.load %arg4[%c3_65, %c0_66, %c0_67] : memref<4x32x32xbf16, #tpu.memory_space<vmem>>, vector<1x32x32xbf16>
    %112 = vector.shape_cast %111 : vector<1x32x32xbf16> to vector<32x32xbf16>
    %c3_68 = arith.constant 3 : index
    %c0_69 = arith.constant 0 : index
    %c0_70 = arith.constant 0 : index
    %113 = vector.load %arg5[%c3_68, %c0_69, %c0_70] : memref<4x32x32xbf16, #tpu.memory_space<vmem>>, vector<1x32x32xbf16>
    %114 = vector.shape_cast %113 : vector<1x32x32xbf16> to vector<32x32xbf16>
    %c3_71 = arith.constant 3 : index
    %c0_72 = arith.constant 0 : index
    %c0_73 = arith.constant 0 : index
    %115 = vector.load %arg6[%c3_71, %c0_72, %c0_73] : memref<4x32x32xbf16, #tpu.memory_space<vmem>>, vector<1x32x32xbf16>
    %116 = vector.shape_cast %115 : vector<1x32x32xbf16> to vector<32x32xbf16>
    %cst_74 = arith.constant dense<0.000000e+00> : vector<16x32xf32>
    %117 = tpu.matmul %2, %110, %cst_74 {dimension_numbers = #tpu.dot_dimension_numbers<[1], [0], [0], [1], [0, 0, 1, 1], [], []>} : vector<16x64xbf16>, vector<64x32xbf16>, vector<16x32xf32> -> vector<16x32xf32>
    %cst_75 = arith.constant dense<0.000000e+00> : vector<32x32xf32>
    %118 = tpu.matmul %5, %112, %cst_75 {dimension_numbers = #tpu.dot_dimension_numbers<[1], [0], [0], [1], [0, 0, 1, 1], [], []>} : vector<32x32xbf16>, vector<32x32xbf16>, vector<32x32xf32> -> vector<32x32xf32>
    %cst_76 = arith.constant dense<0.000000e+00> : vector<32x32xf32>
    %119 = tpu.matmul %5, %114, %cst_76 {dimension_numbers = #tpu.dot_dimension_numbers<[1], [0], [0], [1], [0, 0, 1, 1], [], []>} : vector<32x32xbf16>, vector<32x32xbf16>, vector<32x32xf32> -> vector<32x32xf32>
    %120 = arith.truncf %117 : vector<16x32xf32> to vector<16x32xbf16>
    %121 = vector.shape_cast %120 : vector<16x32xbf16> to vector<2x8x32xbf16>
    %122 = arith.truncf %118 : vector<32x32xf32> to vector<32x32xbf16>
    %123 = vector.shape_cast %122 : vector<32x32xbf16> to vector<2x16x32xbf16>
    %124 = arith.truncf %119 : vector<32x32xf32> to vector<32x32xbf16>
    %125 = vector.shape_cast %124 : vector<32x32xbf16> to vector<2x16x32xbf16>
    "tpu.trace_start"() <{level = 10 : i32, message = "bqd,bkd->bqk"}> : () -> ()
    %cst_77 = arith.constant dense<0.000000e+00> : vector<2x8x16xf32>
    %126 = tpu.matmul %121, %123, %cst_77 {dimension_numbers = #tpu.dot_dimension_numbers<[2], [2], [1], [1], [0, 0, 0, 1, 1, 1], [0], [0]>} : vector<2x8x32xbf16>, vector<2x16x32xbf16>, vector<2x8x16xf32> -> vector<2x8x16xf32>
    "tpu.trace_stop"() : () -> ()
    %cst_78 = arith.constant dense<0xFF800000> : vector<2x8xf32>
    %127 = vector.multi_reduction <maximumf>, %126, %cst_78 [2] : vector<2x8x16xf32> to vector<2x8xf32>
    %128 = vector.shape_cast %127 : vector<2x8xf32> to vector<2x8x1xf32>
    %129 = vector.broadcast %128 : vector<2x8x1xf32> to vector<2x8x16xf32>
    %130 = arith.subf %126, %129 : vector<2x8x16xf32>
    %131 = math.exp %130 : vector<2x8x16xf32>
    %cst_79 = arith.constant dense<0.000000e+00> : vector<2x8xf32>
    %132 = vector.multi_reduction <add>, %131, %cst_79 [2] : vector<2x8x16xf32> to vector<2x8xf32>
    %133 = vector.shape_cast %132 : vector<2x8xf32> to vector<2x8x1xf32>
    %134 = tpu.reciprocal %133 {approx = true} : vector<2x8x1xf32> -> vector<2x8x1xf32>
    %135 = vector.broadcast %134 : vector<2x8x1xf32> to vector<2x8x16xf32>
    %136 = arith.mulf %131, %135 : vector<2x8x16xf32>
    %137 = arith.truncf %136 : vector<2x8x16xf32> to vector<2x8x16xbf16>
    "tpu.trace_start"() <{level = 10 : i32, message = "bqk,bkd->bqd"}> : () -> ()
    %cst_80 = arith.constant dense<0.000000e+00> : vector<2x8x32xf32>
    %138 = tpu.matmul %137, %125, %cst_80 {dimension_numbers = #tpu.dot_dimension_numbers<[2], [1], [1], [2], [0, 0, 0, 1, 1, 2], [0], [0]>} : vector<2x8x16xbf16>, vector<2x16x32xbf16>, vector<2x8x32xf32> -> vector<2x8x32xf32>
    "tpu.trace_stop"() : () -> ()
    %139 = vector.shape_cast %138 : vector<2x8x32xf32> to vector<16x32xf32>
    %140 = arith.truncf %139 : vector<16x32xf32> to vector<16x32xbf16>
    %cst_81 = arith.constant dense<0.000000e+00> : vector<16x32xf32>
    %141 = tpu.matmul %140, %116, %cst_81 {dimension_numbers = #tpu.dot_dimension_numbers<[1], [0], [0], [1], [0, 0, 1, 1], [], []>} : vector<16x32xbf16>, vector<32x32xbf16>, vector<16x32xf32> -> vector<16x32xf32>
    %142 = arith.addf %108, %141 : vector<16x32xf32>
    %143 = vector.shape_cast %142 : vector<16x32xf32> to vector<2x8x32xf32>
    %c0_82 = arith.constant 0 : index
    %c0_83 = arith.constant 0 : index
    %c0_84 = arith.constant 0 : index
    %144 = vector.load %arg7[%c0_82, %c0_83, %c0_84] : memref<2x8x32xf32, #tpu.memory_space<vmem>>, vector<2x8x32xf32>
    tpu.vector_store %arg7[%c0_82, %c0_83, %c0_84], %143 {strides = array<i32>} : memref<2x8x32xf32, #tpu.memory_space<vmem>>, vector<2x8x32xf32>,
    return
  }
  func.func @transform_0(%arg0: i32) -> (i32, i32, i32) {
    %c0_i32 = arith.constant 0 : i32
    %c0_i32_0 = arith.constant 0 : i32
    %c0_i32_1 = arith.constant 0 : i32
    return %arg0, %c0_i32, %c0_i32_0 : i32, i32, i32
  }
  func.func @transform_1(%arg0: i32) -> (i32, i32, i32) {
    %c0_i32 = arith.constant 0 : i32
    %c0_i32_0 = arith.constant 0 : i32
    %c0_i32_1 = arith.constant 0 : i32
    return %arg0, %c0_i32, %c0_i32_0 : i32, i32, i32
  }
  func.func @transform_2(%arg0: i32) -> (i32, i32, i32) {
    %c0_i32 = arith.constant 0 : i32
    %c0_i32_0 = arith.constant 0 : i32
    %c0_i32_1 = arith.constant 0 : i32
    %c0_i32_2 = arith.constant 0 : i32
    return %c0_i32, %c0_i32_0, %c0_i32_1 : i32, i32, i32
  }
  func.func @transform_3(%arg0: i32) -> (i32, i32, i32) {
    %c0_i32 = arith.constant 0 : i32
    %c0_i32_0 = arith.constant 0 : i32
    %c0_i32_1 = arith.constant 0 : i32
    %c0_i32_2 = arith.constant 0 : i32
    return %c0_i32, %c0_i32_0, %c0_i32_1 : i32, i32, i32
  }
  func.func @transform_4(%arg0: i32) -> (i32, i32, i32) {
    %c0_i32 = arith.constant 0 : i32
    %c0_i32_0 = arith.constant 0 : i32
    %c0_i32_1 = arith.constant 0 : i32
    %c0_i32_2 = arith.constant 0 : i32
    return %c0_i32, %c0_i32_0, %c0_i32_1 : i32, i32, i32
  }
  func.func @transform_5(%arg0: i32) -> (i32, i32, i32) {
    %c0_i32 = arith.constant 0 : i32
    %c0_i32_0 = arith.constant 0 : i32
    %c0_i32_1 = arith.constant 0 : i32
    %c0_i32_2 = arith.constant 0 : i32
    return %c0_i32, %c0_i32_0, %c0_i32_1 : i32, i32, i32
  }
  func.func @transform_6(%arg0: i32) -> (i32, i32, i32) {
    %c0_i32 = arith.constant 0 : i32
    %c0_i32_0 = arith.constant 0 : i32
    %c0_i32_1 = arith.constant 0 : i32
    return %arg0, %c0_i32, %c0_i32_0 : i32, i32, i32
  }
}

</mosaic_0001>

<llo_original>
// kernel: tpu_custom_call.1
$region0: #{tpu_custom_call.1}
  #allocation0 [shape = 'u32[]', space=smem, size = 0x4, offset = 0x4, fixed_abs, tag = 'smem constant byte address 0x4 - core index']
  #allocation1 [shape = 'u32[144,128]{1,0:T(1,128)}', space=vmem, size = 0x12000, scoped, tag = 'internal scratch']
  %s0 = inlined_call_operand.hbm [shape: f32[2,8,64], index: 0, kind: input, shape index: {}]
  %s1 = inlined_call_operand.hbm [shape: f32[2,16,32], index: 1, kind: input, shape index: {}]
  %s2 = inlined_call_operand.vmem [shape: bf16[4,64,32], index: 2, kind: input, shape index: {}]
  %s3 = inlined_call_operand.vmem [shape: bf16[4,32,32], index: 3, kind: input, shape index: {}]
  %s4 = inlined_call_operand.vmem [shape: bf16[4,32,32], index: 4, kind: input, shape index: {}]
  %s5 = inlined_call_operand.vmem [shape: bf16[4,32,32], index: 5, kind: input, shape index: {}]
  %s6 = inlined_call_operand.hbm [shape: f32[2,8,32], index: 6, kind: output, shape index: {}]
  %s7 = sld [smem:[#allocation0]]
  $region42: #{tpu_custom_call.1} parent=0
    _
  %s9 = ssub.s32 1, %s7
  %s10 = scalar_select 0, %s9, %s7
  $region1: #{tpu_custom_call.1} parent=0
    #allocation2 [shape = 'u8[8192]{0}', space=vmem, size = 0x2000, scoped, tag = 'input window, operand 0, single buffered']
    #allocation3 [shape = 's32[1]{0}', space=sflag, size = 0x4, scoped, tag = 'scoped memory for tpu_custom_call.1']
    #allocation4 [shape = 's32[1]{0}', space=sflag, size = 0x4, scoped, tag = 'scoped memory for tpu_custom_call.1']
    #allocation5 [shape = 'u8[16384]{0}', space=vmem, size = 0x4000, scoped, tag = 'input window, operand 1, single buffered']
    #allocation6 [shape = 's32[1]{0}', space=sflag, size = 0x4, scoped, tag = 'scoped memory for tpu_custom_call.1']
    #allocation7 [shape = 'u8[8192]{0}', space=vmem, size = 0x2000, scoped, tag = 'output window, operand 0, single buffered']
    %11 = vsyncpa [#allocation3], 0
    %12 = vsyncpa [#allocation6], 0
    %13 = vsyncpa [#allocation4], 0
    // Predicated region
    $region2: #{tpu_custom_call.1} parent=1 // pred_check
      _
    $region3: #{tpu_custom_call.1} parent=1 // pred_check_branch
      %15 = sbr.rel (0) target = $region5
    $region4: #{tpu_custom_call.1} parent=1 // pred_region
      %s17 = ssub.s32 256, 256
      %18 = vsyncadd [#allocation3], %s17
      %s19 = sshll.u32 [#allocation2], 4
      %s20 = int_to_ptr.vmem [resolvable:$true] %s19
      %25 = dma.hbm_to_vmem [thread:$0]  %s0, 256, %s20, [#allocation3], 128, 128, 8
    $region5: #{tpu_custom_call.1} parent=1 // pred_fallthru
      _
    // Predicated region
    $region6: #{tpu_custom_call.1} parent=1 // pred_check
      _
    $region7: #{tpu_custom_call.1} parent=1 // pred_check_branch
      %27 = sbr.rel (0) target = $region9
    $region8: #{tpu_custom_call.1} parent=1 // pred_region
      %s29 = ssub.s32 512, 512
      %30 = vsyncadd [#allocation6], %s29
      %s31 = sshll.u32 [#allocation5], 4
      %s32 = int_to_ptr.vmem [resolvable:$true] %s31
      %37 = dma.hbm_to_vmem [thread:$0]  %s1, 512, %s32, [#allocation6], 128, 128, 8
    $region9: #{tpu_custom_call.1} parent=1 // pred_fallthru
      _
    // Predicated region
    $region10: #{tpu_custom_call.1} parent=1 // pred_check
      _
    $region11: #{tpu_custom_call.1} parent=1 // pred_check_branch
      %39 = sbr.rel (0) target = $region13
    $region12: #{tpu_custom_call.1} parent=1 // pred_region
      _
    $region13: #{tpu_custom_call.1} parent=1 // pred_fallthru
      _
    // Predicated region
    $region14: #{tpu_custom_call.1} parent=1 // pred_check
      _
    $region15: #{tpu_custom_call.1} parent=1 // pred_check_branch
      %41 = sbr.rel (0) target = $region17
    $region16: #{tpu_custom_call.1} parent=1 // pred_region
      _
    $region17: #{tpu_custom_call.1} parent=1 // pred_fallthru
      _
    // Predicated region
    $region18: #{tpu_custom_call.1} parent=1 // pred_check
      _
    $region19: #{tpu_custom_call.1} parent=1 // pred_check_branch
      %43 = sbr.rel (0) target = $region21
    $region20: #{tpu_custom_call.1} parent=1 // pred_region
      _
    $region21: #{tpu_custom_call.1} parent=1 // pred_fallthru
      _
    // Predicated region
    $region22: #{tpu_custom_call.1} parent=1 // pred_check
      _
    $region23: #{tpu_custom_call.1} parent=1 // pred_check_branch
      %45 = sbr.rel (0) target = $region25
    $region24: #{tpu_custom_call.1} parent=1 // pred_region
      _
    $region25: #{tpu_custom_call.1} parent=1 // pred_fallthru
      _
    // Predicated region
    $region26: #{tpu_custom_call.1} parent=1 // pred_check
      _
    $region27: #{tpu_custom_call.1} parent=1 // pred_check_branch
      %47 = sbr.rel (0) target = $region29
    $region28: #{tpu_custom_call.1} parent=1 // pred_region
      %48 = dma.done [#allocation3], 256
    $region29: #{tpu_custom_call.1} parent=1 // pred_fallthru
      _
    // Predicated region
    $region30: #{tpu_custom_call.1} parent=1 // pred_check
      _
    $region31: #{tpu_custom_call.1} parent=1 // pred_check_branch
      %50 = sbr.rel (0) target = $region33
    $region32: #{tpu_custom_call.1} parent=1 // pred_region
      %51 = dma.done [#allocation6], 512
    $region33: #{tpu_custom_call.1} parent=1 // pred_fallthru
      _
    %v53 = vld [vmem:[#allocation2] sm:$0xff]
    %v54 = vld [vmem:[#allocation2 + $0x8] sm:$0xff]
    %v55 = vpack.c.bf16 %v53, %v53
    %v56 = vpack.c.bf16 %v54, %v54
    %v57 = vld [vmem:[#allocation5] sm:$0xff]
    %v58 = vld [vmem:[#allocation5 + $0x8] sm:$0xff]
    %v59 = vld [vmem:[#allocation5 + $0x10] sm:$0xff]
    %v60 = vld [vmem:[#allocation5 + $0x18] sm:$0xff]
    %v61 = vpack.c.bf16 %v58, %v57
    %v62 = vpack.c.bf16 %v60, %v59
    %v63 = vld [vmem:[%s2] sm:$0xf]
    %v64 = vld [vmem:[%s2 + $0x4] sm:$0xf]
    %v65 = vld [vmem:[%s2 + $0x8] sm:$0xf]
    %v66 = vld [vmem:[%s2 + $0xc] sm:$0xf]
    %v67 = vld [vmem:[%s2 + $0x10] sm:$0xf]
    %v68 = vld [vmem:[%s2 + $0x14] sm:$0xf]
    %v69 = vld [vmem:[%s2 + $0x18] sm:$0xf]
    %v70 = vld [vmem:[%s2 + $0x1c] sm:$0xf]
    %v71 = vld [vmem:[%s3] sm:$0xf]
    %v72 = vld [vmem:[%s3 + $0x4] sm:$0xf]
    %v73 = vld [vmem:[%s3 + $0x8] sm:$0xf]
    %v74 = vld [vmem:[%s3 + $0xc] sm:$0xf]
    %v75 = vld [vmem:[%s4] sm:$0xf]
    %v76 = vld [vmem:[%s4 + $0x4] sm:$0xf]
    %v77 = vld [vmem:[%s4 + $0x8] sm:$0xf]
    %v78 = vld [vmem:[%s4 + $0xc] sm:$0xf]
    %v79 = vld [vmem:[%s5] sm:$0xf]
    %v80 = vld [vmem:[%s5 + $0x4] sm:$0xf]
    %v81 = vld [vmem:[%s5 + $0x8] sm:$0xf]
    %v82 = vld [vmem:[%s5 + $0xc] sm:$0xf]
    %v85 = vunpack.c.l.b16 %v55
    %v86 = vunpack.c.l.b16 %v56
    %v87 = vpack.c.b16 %v86, %v85
    %v96 = vunpack.c.l.b16 %v63
    %v97 = vunpack.c.l.b16 %v64
    %v98 = vunpack.c.l.b16 %v65
    %v99 = vunpack.c.l.b16 %v66
    %v100 = vunpack.c.l.b16 %v67
    %v101 = vunpack.c.l.b16 %v68
    %v102 = vunpack.c.l.b16 %v69
    %v103 = vunpack.c.l.b16 %v70
    %v104 = vpack.c.b16 %v97, %v96
    %v105 = vpack.c.b16 %v99, %v98
    %v106 = vpack.c.b16 %v101, %v100
    %v107 = vpack.c.b16 %v103, %v102
    %vm112 = vcmask 523264
    %v114 = vsel %vm112, %v87, 0
    %116 = vmatprep.subr.bf16.mxu0 0
    %117 = vmatpush1.bf16.msra.mxu0 %v104
    %118 = vmatprep.subr.bf16.mxu0 0
    %119 = vmatpush1.bf16.msra.mxu0 %v105
    %120 = vmatprep.subr.bf16.mxu0 0
    %121 = vmatpush1.bf16.msra.mxu0 %v106
    %122 = vmatprep.subr.bf16.mxu0 0
    %123 = vmatpush1.bf16.msra.mxu0 %v107
    %124 = vmatprep.subr.bf16.mxu0 0
    %125 = vmatpush1.bf16.msra.mxu0 0
    %126 = vmatprep.subr.bf16.mxu0 0
    %127 = vmatpush1.bf16.msra.mxu0 0
    %128 = vmatprep.subr.bf16.mxu0 0
    %129 = vmatpush1.bf16.msra.mxu0 0
    %130 = vmatprep.subr.bf16.mxu0 0
    %131 = vmatpush1.bf16.msra.mxu0 0
    %132 = vmatprep.subr.bf16.mxu0 0
    %133 = vmatpush1.bf16.msra.mxu0 0
    %134 = vmatprep.subr.bf16.mxu0 0
    %135 = vmatpush1.bf16.msra.mxu0 0
    %136 = vmatprep.subr.bf16.mxu0 0
    %137 = vmatpush1.bf16.msra.mxu0 0
    %138 = vmatprep.subr.bf16.mxu0 0
    %139 = vmatpush1.bf16.msra.mxu0 0
    %140 = vmatprep.subr.bf16.mxu0 0
    %141 = vmatpush1.bf16.msra.mxu0 0
    %142 = vmatprep.subr.bf16.mxu0 0
    %143 = vmatpush1.bf16.msra.mxu0 0
    %144 = vmatprep.subr.bf16.mxu0 0
    %145 = vmatpush1.bf16.msra.mxu0 0
    %146 = vmatprep.subr.bf16.mxu0 0
    %147 = vmatpush1.bf16.msra.mxu0 0
    %148 = vmatprep.mubr.bf16.mxu0 0
    %149 = vmatmul.mubr.bf16.gmra.mrb[0].mxu0 %v114
    %v150 = vpop.f32.mrb[0].mxu0
    %v151 = vadd.f32 0.0, %v150
    %v152 = vpop.f32.mrb[0].mxu0
    %v153 = vpop.f32.mrb[0].mxu0
    %v154 = vadd.f32 0.0, %v153
    %v155 = vpop.f32.mrb[0].mxu0
    %156 = vdwg.mxu0
    %v161 = vunpack.c.l.b16 %v71
    %v162 = vunpack.c.l.b16 %v72
    %v163 = vunpack.c.l.b16 %v73
    %v164 = vunpack.c.l.b16 %v74
    %v165 = vpack.c.b16 %v162, %v161
    %v166 = vpack.c.b16 %v164, %v163
    %vm169 = vcmask 261120
    %v171 = vsel %vm169, %v61, 0
    %v174 = vsel %vm169, %v62, 0
    %176 = vmatprep.subr.bf16.mxu0 0
    %177 = vmatpush1.bf16.msra.mxu0 %v165
    %178 = vmatprep.subr.bf16.mxu0 0
    %179 = vmatpush1.bf16.msra.mxu0 %v166
    %180 = vmatprep.subr.bf16.mxu0 0
    %181 = vmatpush1.bf16.msra.mxu0 0
    %182 = vmatprep.subr.bf16.mxu0 0
    %183 = vmatpush1.bf16.msra.mxu0 0
    %184 = vmatprep.subr.bf16.mxu0 0
    %185 = vmatpush1.bf16.msra.mxu0 0
    %186 = vmatprep.subr.bf16.mxu0 0
    %187 = vmatpush1.bf16.msra.mxu0 0
    %188 = vmatprep.subr.bf16.mxu0 0
    %189 = vmatpush1.bf16.msra.mxu0 0
    %190 = vmatprep.subr.bf16.mxu0 0
    %191 = vmatpush1.bf16.msra.mxu0 0
    %192 = vmatprep.subr.bf16.mxu0 0
    %193 = vmatpush1.bf16.msra.mxu0 0
    %194 = vmatprep.subr.bf16.mxu0 0
    %195 = vmatpush1.bf16.msra.mxu0 0
    %196 = vmatprep.subr.bf16.mxu0 0
    %197 = vmatpush1.bf16.msra.mxu0 0
    %198 = vmatprep.subr.bf16.mxu0 0
    %199 = vmatpush1.bf16.msra.mxu0 0
    %200 = vmatprep.subr.bf16.mxu0 0
    %201 = vmatpush1.bf16.msra.mxu0 0
    %202 = vmatprep.subr.bf16.mxu0 0
    %203 = vmatpush1.bf16.msra.mxu0 0
    %204 = vmatprep.subr.bf16.mxu0 0
    %205 = vmatpush1.bf16.msra.mxu0 0
    %206 = vmatprep.subr.bf16.mxu0 0
    %207 = vmatpush1.bf16.msra.mxu0 0
    %208 = vmatprep.mubr.bf16.mxu0 0
    %209 = vmatmul.mubr.bf16.gmra.mrb[0].mxu0 %v171
    %v210 = vpop.f32.mrb[0].mxu0
    %v211 = vadd.f32 0.0, %v210
    %v212 = vpop.f32.mrb[0].mxu0
    %v213 = vpop.f32.mrb[0].mxu0
    %v214 = vadd.f32 0.0, %v213
    %v215 = vpop.f32.mrb[0].mxu0
    %216 = vmatprep.mubr.bf16.mxu0 0
    %217 = vmatmul.mubr.bf16.gmra.mrb[0].mxu0 %v174
    %v218 = vpop.f32.mrb[0].mxu0
    %v219 = vadd.f32 0.0, %v218
    %v220 = vpop.f32.mrb[0].mxu0
    %v221 = vpop.f32.mrb[0].mxu0
    %v222 = vadd.f32 0.0, %v221
    %v223 = vpop.f32.mrb[0].mxu0
    %224 = vdwg.mxu0
    %v229 = vunpack.c.l.b16 %v75
    %v230 = vunpack.c.l.b16 %v76
    %v231 = vunpack.c.l.b16 %v77
    %v232 = vunpack.c.l.b16 %v78
    %v233 = vpack.c.b16 %v230, %v229
    %v234 = vpack.c.b16 %v232, %v231
    %237 = vmatprep.subr.bf16.mxu0 0
    %238 = vmatpush1.bf16.msra.mxu0 %v233
    %239 = vmatprep.subr.bf16.mxu0 0
    %240 = vmatpush1.bf16.msra.mxu0 %v234
    %241 = vmatprep.subr.bf16.mxu0 0
    %242 = vmatpush1.bf16.msra.mxu0 0
    %243 = vmatprep.subr.bf16.mxu0 0
    %244 = vmatpush1.bf16.msra.mxu0 0
    %245 = vmatprep.subr.bf16.mxu0 0
    %246 = vmatpush1.bf16.msra.mxu0 0
    %247 = vmatprep.subr.bf16.mxu0 0
    %248 = vmatpush1.bf16.msra.mxu0 0
    %249 = vmatprep.subr.bf16.mxu0 0
    %250 = vmatpush1.bf16.msra.mxu0 0
    %251 = vmatprep.subr.bf16.mxu0 0
    %252 = vmatpush1.bf16.msra.mxu0 0
    %253 = vmatprep.subr.bf16.mxu0 0
    %254 = vmatpush1.bf16.msra.mxu0 0
    %255 = vmatprep.subr.bf16.mxu0 0
    %256 = vmatpush1.bf16.msra.mxu0 0
    %257 = vmatprep.subr.bf16.mxu0 0
    %258 = vmatpush1.bf16.msra.mxu0 0
    %259 = vmatprep.subr.bf16.mxu0 0
    %260 = vmatpush1.bf16.msra.mxu0 0
    %261 = vmatprep.subr.bf16.mxu0 0
    %262 = vmatpush1.bf16.msra.mxu0 0
    %263 = vmatprep.subr.bf16.mxu0 0
    %264 = vmatpush1.bf16.msra.mxu0 0
    %265 = vmatprep.subr.bf16.mxu0 0
    %266 = vmatpush1.bf16.msra.mxu0 0
    %267 = vmatprep.subr.bf16.mxu0 0
    %268 = vmatpush1.bf16.msra.mxu0 0
    %269 = vmatprep.mubr.bf16.mxu0 0
    %270 = vmatmul.mubr.bf16.gmra.mrb[0].mxu0 %v171
    %v271 = vpop.f32.mrb[0].mxu0
    %v272 = vadd.f32 0.0, %v271
    %v273 = vpop.f32.mrb[0].mxu0
    %v274 = vpop.f32.mrb[0].mxu0
    %v275 = vadd.f32 0.0, %v274
    %v276 = vpop.f32.mrb[0].mxu0
    %277 = vmatprep.mubr.bf16.mxu0 0
    %278 = vmatmul.mubr.bf16.gmra.mrb[0].mxu0 %v174
    %v279 = vpop.f32.mrb[0].mxu0
    %v280 = vadd.f32 0.0, %v279
    %v281 = vpop.f32.mrb[0].mxu0
    %v282 = vpop.f32.mrb[0].mxu0
    %v283 = vadd.f32 0.0, %v282
    %v284 = vpop.f32.mrb[0].mxu0
    %285 = vdwg.mxu0
    %v286 = vpack.c.bf16 %v154, %v151
    %v288 = vunpack.c.l.b16 %v286
    %v289 = vunpack.c.h.b16 %v286
    %v290 = vpack.c.b16 %v288, %v288
    %v291 = vpack.c.b16 %v289, %v289
    %v292 = vpack.c.bf16 %v214, %v211
    %v293 = vpack.c.bf16 %v222, %v219
    %v294 = vpack.c.bf16 %v275, %v272
    %v295 = vpack.c.bf16 %v283, %v280
    %v297 = vsel %vm169, %v290, 0
    %v300 = vsel %vm169, %v292, 0
    %302 = vmatprep.subr.bf16.mxu0 0
    %303 = vmatpush1.bf16.xpose.msra.mxu0 %v300
    %304 = vmatprep.subr.bf16.mxu0 0
    %305 = vmatpush1.bf16.xpose.msra.mxu0 0
    %306 = vmatprep.subr.bf16.mxu0 0
    %307 = vmatpush1.bf16.xpose.msra.mxu0 0
    %308 = vmatprep.subr.bf16.mxu0 0
    %309 = vmatpush1.bf16.xpose.msra.mxu0 0
    %310 = vmatprep.subr.bf16.mxu0 0
    %311 = vmatpush1.bf16.xpose.msra.mxu0 0
    %312 = vmatprep.subr.bf16.mxu0 0
    %313 = vmatpush1.bf16.xpose.msra.mxu0 0
    %314 = vmatprep.subr.bf16.mxu0 0
    %315 = vmatpush1.bf16.xpose.msra.mxu0 0
    %316 = vmatprep.subr.bf16.mxu0 0
    %317 = vmatpush1.bf16.xpose.msra.mxu0 0
    %318 = vmatprep.subr.bf16.mxu0 0
    %319 = vmatpush1.bf16.xpose.msra.mxu0 0
    %320 = vmatprep.subr.bf16.mxu0 0
    %321 = vmatpush1.bf16.xpose.msra.mxu0 0
    %322 = vmatprep.subr.bf16.mxu0 0
    %323 = vmatpush1.bf16.xpose.msra.mxu0 0
    %324 = vmatprep.subr.bf16.mxu0 0
    %325 = vmatpush1.bf16.xpose.msra.mxu0 0
    %326 = vmatprep.subr.bf16.mxu0 0
    %327 = vmatpush1.bf16.xpose.msra.mxu0 0
    %328 = vmatprep.subr.bf16.mxu0 0
    %329 = vmatpush1.bf16.xpose.msra.mxu0 0
    %330 = vmatprep.subr.bf16.mxu0 0
    %331 = vmatpush1.bf16.xpose.msra.mxu0 0
    %332 = vmatprep.subr.bf16.mxu0 0
    %333 = vmatpush1.bf16.xpose.msra.mxu0 0
    %334 = vmatprep.mubr.bf16.mxu0 0
    %335 = vmatmul.mubr.bf16.gmra.mrb[0].mxu0 %v297
    %v336 = vpop.f32.mrb[0].mxu0
    %v337 = vadd.f32 0.0, %v336
    %v338 = vpop.f32.mrb[0].mxu0
    %v339 = vpop.f32.mrb[0].mxu0
    %v340 = vpop.f32.mrb[0].mxu0
    %341 = vdwg.mxu0
    %v343 = vsel %vm169, %v291, 0
    %v346 = vsel %vm169, %v293, 0
    %348 = vmatprep.subr.bf16.mxu0 0
    %349 = vmatpush1.bf16.xpose.msra.mxu0 %v346
    %350 = vmatprep.subr.bf16.mxu0 0
    %351 = vmatpush1.bf16.xpose.msra.mxu0 0
    %352 = vmatprep.subr.bf16.mxu0 0
    %353 = vmatpush1.bf16.xpose.msra.mxu0 0
    %354 = vmatprep.subr.bf16.mxu0 0
    %355 = vmatpush1.bf16.xpose.msra.mxu0 0
    %356 = vmatprep.subr.bf16.mxu0 0
    %357 = vmatpush1.bf16.xpose.msra.mxu0 0
    %358 = vmatprep.subr.bf16.mxu0 0
    %359 = vmatpush1.bf16.xpose.msra.mxu0 0
    %360 = vmatprep.subr.bf16.mxu0 0
    %361 = vmatpush1.bf16.xpose.msra.mxu0 0
    %362 = vmatprep.subr.bf16.mxu0 0
    %363 = vmatpush1.bf16.xpose.msra.mxu0 0
    %364 = vmatprep.subr.bf16.mxu0 0
    %365 = vmatpush1.bf16.xpose.msra.mxu0 0
    %366 = vmatprep.subr.bf16.mxu0 0
    %367 = vmatpush1.bf16.xpose.msra.mxu0 0
    %368 = vmatprep.subr.bf16.mxu0 0
    %369 = vmatpush1.bf16.xpose.msra.mxu0 0
    %370 = vmatprep.subr.bf16.mxu0 0
    %371 = vmatpush1.bf16.xpose.msra.mxu0 0
    %372 = vmatprep.subr.bf16.mxu0 0
    %373 = vmatpush1.bf16.xpose.msra.mxu0 0
    %374 = vmatprep.subr.bf16.mxu0 0
    %375 = vmatpush1.bf16.xpose.msra.mxu0 0
    %376 = vmatprep.subr.bf16.mxu0 0
    %377 = vmatpush1.bf16.xpose.msra.mxu0 0
    %378 = vmatprep.subr.bf16.mxu0 0
    %379 = vmatpush1.bf16.xpose.msra.mxu0 0
    %380 = vmatprep.mubr.bf16.mxu0 0
    %381 = vmatmul.mubr.bf16.gmra.mrb[0].mxu0 %v343
    %v382 = vpop.f32.mrb[0].mxu0
    %v383 = vadd.f32 0.0, %v382
    %v384 = vpop.f32.mrb[0].mxu0
    %v385 = vpop.f32.mrb[0].mxu0
    %v386 = vpop.f32.mrb[0].mxu0
    %387 = vdwg.mxu0
    %vm388 = vcmask 130048
    %v389 = vsel %vm388, %v337, -inf
    %390 = vmax.xlane.f32.xlu0 %v389
    %v391 = vpop.xlane.xlu0 %390
    %v392 = vsel %vm388, %v383, -inf
    %393 = vmax.xlane.f32.xlu0 %v392
    %v394 = vpop.xlane.xlu0 %393
    %v395 = vsub.f32 %v337, %v391
    %v396 = vsub.f32 %v383, %v394
    %v397 = vmul.f32 %v395, 1.442695
    %v398 = vpow.pop %v397
    %v399 = vmul.f32 %v396, 1.442695
    %v400 = vpow.pop %v399
    %v401 = vsel %vm388, %v398, 0.0
    %402 = vadd.xlane.f32.xlu0 %v401
    %v403 = vpop.xlane.xlu0 %402
    %v404 = vsel %vm388, %v400, 0.0
    %405 = vadd.xlane.f32.xlu0 %v404
    %v406 = vpop.xlane.xlu0 %405
    %v407 = vrcp.pop %v403
    %v408 = vrcp.pop %v406
    %v409 = vmul.f32 %v398, %v407
    %v410 = vmul.f32 %v400, %v408
    %v411 = vpack.c.bf16 %v409, %v409
    %v412 = vpack.c.bf16 %v410, %v410
    %v414 = vsel %vm388, %v411, 0
    %416 = vmatprep.subr.bf16.mxu0 0
    %417 = vmatpush1.bf16.msra.mxu0 %v294
    %418 = vmatprep.subr.bf16.mxu0 0
    %419 = vmatpush1.bf16.msra.mxu0 0
    %420 = vmatprep.subr.bf16.mxu0 0
    %421 = vmatpush1.bf16.msra.mxu0 0
    %422 = vmatprep.subr.bf16.mxu0 0
    %423 = vmatpush1.bf16.msra.mxu0 0
    %424 = vmatprep.subr.bf16.mxu0 0
    %425 = vmatpush1.bf16.msra.mxu0 0
    %426 = vmatprep.subr.bf16.mxu0 0
    %427 = vmatpush1.bf16.msra.mxu0 0
    %428 = vmatprep.subr.bf16.mxu0 0
    %429 = vmatpush1.bf16.msra.mxu0 0
    %430 = vmatprep.subr.bf16.mxu0 0
    %431 = vmatpush1.bf16.msra.mxu0 0
    %432 = vmatprep.subr.bf16.mxu0 0
    %433 = vmatpush1.bf16.msra.mxu0 0
    %434 = vmatprep.subr.bf16.mxu0 0
    %435 = vmatpush1.bf16.msra.mxu0 0
    %436 = vmatprep.subr.bf16.mxu0 0
    %437 = vmatpush1.bf16.msra.mxu0 0
    %438 = vmatprep.subr.bf16.mxu0 0
    %439 = vmatpush1.bf16.msra.mxu0 0
    %440 = vmatprep.subr.bf16.mxu0 0
    %441 = vmatpush1.bf16.msra.mxu0 0
    %442 = vmatprep.subr.bf16.mxu0 0
    %443 = vmatpush1.bf16.msra.mxu0 0
    %444 = vmatprep.subr.bf16.mxu0 0
    %445 = vmatpush1.bf16.msra.mxu0 0
    %446 = vmatprep.subr.bf16.mxu0 0
    %447 = vmatpush1.bf16.msra.mxu0 0
    %448 = vmatprep.mubr.bf16.mxu0 0
    %449 = vmatmul.mubr.bf16.gmra.mrb[0].mxu0 %v414
    %v450 = vpop.f32.mrb[0].mxu0
    %v451 = vadd.f32 0.0, %v450
    %v452 = vpop.f32.mrb[0].mxu0
    %v453 = vpop.f32.mrb[0].mxu0
    %v454 = vpop.f32.mrb[0].mxu0
    %455 = vdwg.mxu0
    %v457 = vsel %vm388, %v412, 0
    %459 = vmatprep.subr.bf16.mxu0 0
    %460 = vmatpush1.bf16.msra.mxu0 %v295
    %461 = vmatprep.subr.bf16.mxu0 0
    %462 = vmatpush1.bf16.msra.mxu0 0
    %463 = vmatprep.subr.bf16.mxu0 0
    %464 = vmatpush1.bf16.msra.mxu0 0
    %465 = vmatprep.subr.bf16.mxu0 0
    %466 = vmatpush1.bf16.msra.mxu0 0
    %467 = vmatprep.subr.bf16.mxu0 0
    %468 = vmatpush1.bf16.msra.mxu0 0
    %469 = vmatprep.subr.bf16.mxu0 0
    %470 = vmatpush1.bf16.msra.mxu0 0
    %471 = vmatprep.subr.bf16.mxu0 0
    %472 = vmatpush1.bf16.msra.mxu0 0
    %473 = vmatprep.subr.bf16.mxu0 0
    %474 = vmatpush1.bf16.msra.mxu0 0
    %475 = vmatprep.subr.bf16.mxu0 0
    %476 = vmatpush1.bf16.msra.mxu0 0
    %477 = vmatprep.subr.bf16.mxu0 0
    %478 = vmatpush1.bf16.msra.mxu0 0
    %479 = vmatprep.subr.bf16.mxu0 0
    %480 = vmatpush1.bf16.msra.mxu0 0
    %481 = vmatprep.subr.bf16.mxu0 0
    %482 = vmatpush1.bf16.msra.mxu0 0
    %483 = vmatprep.subr.bf16.mxu0 0
    %484 = vmatpush1.bf16.msra.mxu0 0
    %485 = vmatprep.subr.bf16.mxu0 0
    %486 = vmatpush1.bf16.msra.mxu0 0
    %487 = vmatprep.subr.bf16.mxu0 0
    %488 = vmatpush1.bf16.msra.mxu0 0
    %489 = vmatprep.subr.bf16.mxu0 0
    %490 = vmatpush1.bf16.msra.mxu0 0
    %491 = vmatprep.mubr.bf16.mxu0 0
    %492 = vmatmul.mubr.bf16.gmra.mrb[0].mxu0 %v457
    %v493 = vpop.f32.mrb[0].mxu0
    %v494 = vadd.f32 0.0, %v493
    %v495 = vpop.f32.mrb[0].mxu0
    %v496 = vpop.f32.mrb[0].mxu0
    %v497 = vpop.f32.mrb[0].mxu0
    %498 = vdwg.mxu0
    %v499 = vpack.c.bf16 %v494, %v451
    %s500 = scalar_lea.vmem %s2, 32
    %v501 = vld [vmem:[%s500] sm:$0xf]
    %v502 = vld [vmem:[%s500 + $0x4] sm:$0xf]
    %v503 = vld [vmem:[%s500 + $0x8] sm:$0xf]
    %v504 = vld [vmem:[%s500 + $0xc] sm:$0xf]
    %v505 = vld [vmem:[%s500 + $0x10] sm:$0xf]
    %v506 = vld [vmem:[%s500 + $0x14] sm:$0xf]
    %v507 = vld [vmem:[%s500 + $0x18] sm:$0xf]
    %v508 = vld [vmem:[%s500 + $0x1c] sm:$0xf]
    %s509 = scalar_lea.vmem %s3, 16
    %v510 = vld [vmem:[%s509] sm:$0xf]
    %v511 = vld [vmem:[%s509 + $0x4] sm:$0xf]
    %v512 = vld [vmem:[%s509 + $0x8] sm:$0xf]
    %v513 = vld [vmem:[%s509 + $0xc] sm:$0xf]
    %s514 = scalar_lea.vmem %s4, 16
    %v515 = vld [vmem:[%s514] sm:$0xf]
    %v516 = vld [vmem:[%s514 + $0x4] sm:$0xf]
    %v517 = vld [vmem:[%s514 + $0x8] sm:$0xf]
    %v518 = vld [vmem:[%s514 + $0xc] sm:$0xf]
    %s519 = scalar_lea.vmem %s5, 16
    %v520 = vld [vmem:[%s519] sm:$0xf]
    %v521 = vld [vmem:[%s519 + $0x4] sm:$0xf]
    %v522 = vld [vmem:[%s519 + $0x8] sm:$0xf]
    %v523 = vld [vmem:[%s519 + $0xc] sm:$0xf]
    %v532 = vunpack.c.l.b16 %v501
    %v533 = vunpack.c.l.b16 %v502
    %v534 = vunpack.c.l.b16 %v503
    %v535 = vunpack.c.l.b16 %v504
    %v536 = vunpack.c.l.b16 %v505
    %v537 = vunpack.c.l.b16 %v506
    %v538 = vunpack.c.l.b16 %v507
    %v539 = vunpack.c.l.b16 %v508
    %v540 = vpack.c.b16 %v533, %v532
    %v541 = vpack.c.b16 %v535, %v534
    %v542 = vpack.c.b16 %v537, %v536
    %v543 = vpack.c.b16 %v539, %v538
    %548 = vmatprep.subr.bf16.mxu0 0
    %549 = vmatpush1.bf16.msra.mxu0 %v540
    %550 = vmatprep.subr.bf16.mxu0 0
    %551 = vmatpush1.bf16.msra.mxu0 %v541
    %552 = vmatprep.subr.bf16.mxu0 0
    %553 = vmatpush1.bf16.msra.mxu0 %v542
    %554 = vmatprep.subr.bf16.mxu0 0
    %555 = vmatpush1.bf16.msra.mxu0 %v543
    %556 = vmatprep.subr.bf16.mxu0 0
    %557 = vmatpush1.bf16.msra.mxu0 0
    %558 = vmatprep.subr.bf16.mxu0 0
    %559 = vmatpush1.bf16.msra.mxu0 0
    %560 = vmatprep.subr.bf16.mxu0 0
    %561 = vmatpush1.bf16.msra.mxu0 0
    %562 = vmatprep.subr.bf16.mxu0 0
    %563 = vmatpush1.bf16.msra.mxu0 0
    %564 = vmatprep.subr.bf16.mxu0 0
    %565 = vmatpush1.bf16.msra.mxu0 0
    %566 = vmatprep.subr.bf16.mxu0 0
    %567 = vmatpush1.bf16.msra.mxu0 0
    %568 = vmatprep.subr.bf16.mxu0 0
    %569 = vmatpush1.bf16.msra.mxu0 0
    %570 = vmatprep.subr.bf16.mxu0 0
    %571 = vmatpush1.bf16.msra.mxu0 0
    %572 = vmatprep.subr.bf16.mxu0 0
    %573 = vmatpush1.bf16.msra.mxu0 0
    %574 = vmatprep.subr.bf16.mxu0 0
    %575 = vmatpush1.bf16.msra.mxu0 0
    %576 = vmatprep.subr.bf16.mxu0 0
    %577 = vmatpush1.bf16.msra.mxu0 0
    %578 = vmatprep.subr.bf16.mxu0 0
    %579 = vmatpush1.bf16.msra.mxu0 0
    %580 = vmatprep.mubr.bf16.mxu0 0
    %581 = vmatmul.mubr.bf16.gmra.mrb[0].mxu0 %v114
    %v582 = vpop.f32.mrb[0].mxu0
    %v583 = vadd.f32 0.0, %v582
    %v584 = vpop.f32.mrb[0].mxu0
    %v585 = vpop.f32.mrb[0].mxu0
    %v586 = vadd.f32 0.0, %v585
    %v587 = vpop.f32.mrb[0].mxu0
    %588 = vdwg.mxu0
    %v593 = vunpack.c.l.b16 %v510
    %v594 = vunpack.c.l.b16 %v511
    %v595 = vunpack.c.l.b16 %v512
    %v596 = vunpack.c.l.b16 %v513
    %v597 = vpack.c.b16 %v594, %v593
    %v598 = vpack.c.b16 %v596, %v595
    %601 = vmatprep.subr.bf16.mxu0 0
    %602 = vmatpush1.bf16.msra.mxu0 %v597
    %603 = vmatprep.subr.bf16.mxu0 0
    %604 = vmatpush1.bf16.msra.mxu0 %v598
    %605 = vmatprep.subr.bf16.mxu0 0
    %606 = vmatpush1.bf16.msra.mxu0 0
    %607 = vmatprep.subr.bf16.mxu0 0
    %608 = vmatpush1.bf16.msra.mxu0 0
    %609 = vmatprep.subr.bf16.mxu0 0
    %610 = vmatpush1.bf16.msra.mxu0 0
    %611 = vmatprep.subr.bf16.mxu0 0
    %612 = vmatpush1.bf16.msra.mxu0 0
    %613 = vmatprep.subr.bf16.mxu0 0
    %614 = vmatpush1.bf16.msra.mxu0 0
    %615 = vmatprep.subr.bf16.mxu0 0
    %616 = vmatpush1.bf16.msra.mxu0 0
    %617 = vmatprep.subr.bf16.mxu0 0
    %618 = vmatpush1.bf16.msra.mxu0 0
    %619 = vmatprep.subr.bf16.mxu0 0
    %620 = vmatpush1.bf16.msra.mxu0 0
    %621 = vmatprep.subr.bf16.mxu0 0
    %622 = vmatpush1.bf16.msra.mxu0 0
    %623 = vmatprep.subr.bf16.mxu0 0
    %624 = vmatpush1.bf16.msra.mxu0 0
    %625 = vmatprep.subr.bf16.mxu0 0
    %626 = vmatpush1.bf16.msra.mxu0 0
    %627 = vmatprep.subr.bf16.mxu0 0
    %628 = vmatpush1.bf16.msra.mxu0 0
    %629 = vmatprep.subr.bf16.mxu0 0
    %630 = vmatpush1.bf16.msra.mxu0 0
    %631 = vmatprep.subr.bf16.mxu0 0
    %632 = vmatpush1.bf16.msra.mxu0 0
    %633 = vmatprep.mubr.bf16.mxu0 0
    %634 = vmatmul.mubr.bf16.gmra.mrb[0].mxu0 %v171
    %v635 = vpop.f32.mrb[0].mxu0
    %v636 = vadd.f32 0.0, %v635
    %v637 = vpop.f32.mrb[0].mxu0
    %v638 = vpop.f32.mrb[0].mxu0
    %v639 = vadd.f32 0.0, %v638
    %v640 = vpop.f32.mrb[0].mxu0
    %641 = vmatprep.mubr.bf16.mxu0 0
    %642 = vmatmul.mubr.bf16.gmra.mrb[0].mxu0 %v174
    %v643 = vpop.f32.mrb[0].mxu0
    %v644 = vadd.f32 0.0, %v643
    %v645 = vpop.f32.mrb[0].mxu0
    %v646 = vpop.f32.mrb[0].mxu0
    %v647 = vadd.f32 0.0, %v646
    %v648 = vpop.f32.mrb[0].mxu0
    %649 = vdwg.mxu0
    %v654 = vunpack.c.l.b16 %v515
    %v655 = vunpack.c.l.b16 %v516
    %v656 = vunpack.c.l.b16 %v517
    %v657 = vunpack.c.l.b16 %v518
    %v658 = vpack.c.b16 %v655, %v654
    %v659 = vpack.c.b16 %v657, %v656
    %662 = vmatprep.subr.bf16.mxu0 0
    %663 = vmatpush1.bf16.msra.mxu0 %v658
    %664 = vmatprep.subr.bf16.mxu0 0
    %665 = vmatpush1.bf16.msra.mxu0 %v659
    %666 = vmatprep.subr.bf16.mxu0 0
    %667 = vmatpush1.bf16.msra.mxu0 0
    %668 = vmatprep.subr.bf16.mxu0 0
    %669 = vmatpush1.bf16.msra.mxu0 0
    %670 = vmatprep.subr.bf16.mxu0 0
    %671 = vmatpush1.bf16.msra.mxu0 0
    %672 = vmatprep.subr.bf16.mxu0 0
    %673 = vmatpush1.bf16.msra.mxu0 0
    %674 = vmatprep.subr.bf16.mxu0 0
    %675 = vmatpush1.bf16.msra.mxu0 0
    %676 = vmatprep.subr.bf16.mxu0 0
    %677 = vmatpush1.bf16.msra.mxu0 0
    %678 = vmatprep.subr.bf16.mxu0 0
    %679 = vmatpush1.bf16.msra.mxu0 0
    %680 = vmatprep.subr.bf16.mxu0 0
    %681 = vmatpush1.bf16.msra.mxu0 0
    %682 = vmatprep.subr.bf16.mxu0 0
    %683 = vmatpush1.bf16.msra.mxu0 0
    %684 = vmatprep.subr.bf16.mxu0 0
    %685 = vmatpush1.bf16.msra.mxu0 0
    %686 = vmatprep.subr.bf16.mxu0 0
    %687 = vmatpush1.bf16.msra.mxu0 0
    %688 = vmatprep.subr.bf16.mxu0 0
    %689 = vmatpush1.bf16.msra.mxu0 0
    %690 = vmatprep.subr.bf16.mxu0 0
    %691 = vmatpush1.bf16.msra.mxu0 0
    %692 = vmatprep.subr.bf16.mxu0 0
    %693 = vmatpush1.bf16.msra.mxu0 0
    %694 = vmatprep.mubr.bf16.mxu0 0
    %695 = vmatmul.mubr.bf16.gmra.mrb[0].mxu0 %v171
    %v696 = vpop.f32.mrb[0].mxu0
    %v697 = vadd.f32 0.0, %v696
    %v698 = vpop.f32.mrb[0].mxu0
    %v699 = vpop.f32.mrb[0].mxu0
    %v700 = vadd.f32 0.0, %v699
    %v701 = vpop.f32.mrb[0].mxu0
    %702 = vmatprep.mubr.bf16.mxu0 0
    %703 = vmatmul.mubr.bf16.gmra.mrb[0].mxu0 %v174
    %v704 = vpop.f32.mrb[0].mxu0
    %v705 = vadd.f32 0.0, %v704
    %v706 = vpop.f32.mrb[0].mxu0
    %v707 = vpop.f32.mrb[0].mxu0
    %v708 = vadd.f32 0.0, %v707
    %v709 = vpop.f32.mrb[0].mxu0
    %710 = vdwg.mxu0
    %v711 = vpack.c.bf16 %v586, %v583
    %v713 = vunpack.c.l.b16 %v711
    %v714 = vunpack.c.h.b16 %v711
    %v715 = vpack.c.b16 %v713, %v713
    %v716 = vpack.c.b16 %v714, %v714
    %v717 = vpack.c.bf16 %v639, %v636
    %v718 = vpack.c.bf16 %v647, %v644
    %v719 = vpack.c.bf16 %v700, %v697
    %v720 = vpack.c.bf16 %v708, %v705
    %v722 = vsel %vm169, %v715, 0
    %v725 = vsel %vm169, %v717, 0
    %727 = vmatprep.subr.bf16.mxu0 0
    %728 = vmatpush1.bf16.xpose.msra.mxu0 %v725
    %729 = vmatprep.subr.bf16.mxu0 0
    %730 = vmatpush1.bf16.xpose.msra.mxu0 0
    %731 = vmatprep.subr.bf16.mxu0 0
    %732 = vmatpush1.bf16.xpose.msra.mxu0 0
    %733 = vmatprep.subr.bf16.mxu0 0
    %734 = vmatpush1.bf16.xpose.msra.mxu0 0
    %735 = vmatprep.subr.bf16.mxu0 0
    %736 = vmatpush1.bf16.xpose.msra.mxu0 0
    %737 = vmatprep.subr.bf16.mxu0 0
    %738 = vmatpush1.bf16.xpose.msra.mxu0 0
    %739 = vmatprep.subr.bf16.mxu0 0
    %740 = vmatpush1.bf16.xpose.msra.mxu0 0
    %741 = vmatprep.subr.bf16.mxu0 0
    %742 = vmatpush1.bf16.xpose.msra.mxu0 0
    %743 = vmatprep.subr.bf16.mxu0 0
    %744 = vmatpush1.bf16.xpose.msra.mxu0 0
    %745 = vmatprep.subr.bf16.mxu0 0
    %746 = vmatpush1.bf16.xpose.msra.mxu0 0
    %747 = vmatprep.subr.bf16.mxu0 0
    %748 = vmatpush1.bf16.xpose.msra.mxu0 0
    %749 = vmatprep.subr.bf16.mxu0 0
    %750 = vmatpush1.bf16.xpose.msra.mxu0 0
    %751 = vmatprep.subr.bf16.mxu0 0
    %752 = vmatpush1.bf16.xpose.msra.mxu0 0
    %753 = vmatprep.subr.bf16.mxu0 0
    %754 = vmatpush1.bf16.xpose.msra.mxu0 0
    %755 = vmatprep.subr.bf16.mxu0 0
    %756 = vmatpush1.bf16.xpose.msra.mxu0 0
    %757 = vmatprep.subr.bf16.mxu0 0
    %758 = vmatpush1.bf16.xpose.msra.mxu0 0
    %759 = vmatprep.mubr.bf16.mxu0 0
    %760 = vmatmul.mubr.bf16.gmra.mrb[0].mxu0 %v722
    %v761 = vpop.f32.mrb[0].mxu0
    %v762 = vadd.f32 0.0, %v761
    %v763 = vpop.f32.mrb[0].mxu0
    %v764 = vpop.f32.mrb[0].mxu0
    %v765 = vpop.f32.mrb[0].mxu0
    %766 = vdwg.mxu0
    %v768 = vsel %vm169, %v716, 0
    %v771 = vsel %vm169, %v718, 0
    %773 = vmatprep.subr.bf16.mxu0 0
    %774 = vmatpush1.bf16.xpose.msra.mxu0 %v771
    %775 = vmatprep.subr.bf16.mxu0 0
    %776 = vmatpush1.bf16.xpose.msra.mxu0 0
    %777 = vmatprep.subr.bf16.mxu0 0
    %778 = vmatpush1.bf16.xpose.msra.mxu0 0
    %779 = vmatprep.subr.bf16.mxu0 0
    %780 = vmatpush1.bf16.xpose.msra.mxu0 0
    %781 = vmatprep.subr.bf16.mxu0 0
    %782 = vmatpush1.bf16.xpose.msra.mxu0 0
    %783 = vmatprep.subr.bf16.mxu0 0
    %784 = vmatpush1.bf16.xpose.msra.mxu0 0
    %785 = vmatprep.subr.bf16.mxu0 0
    %786 = vmatpush1.bf16.xpose.msra.mxu0 0
    %787 = vmatprep.subr.bf16.mxu0 0
    %788 = vmatpush1.bf16.xpose.msra.mxu0 0
    %789 = vmatprep.subr.bf16.mxu0 0
    %790 = vmatpush1.bf16.xpose.msra.mxu0 0
    %791 = vmatprep.subr.bf16.mxu0 0
    %792 = vmatpush1.bf16.xpose.msra.mxu0 0
    %793 = vmatprep.subr.bf16.mxu0 0
    %794 = vmatpush1.bf16.xpose.msra.mxu0 0
    %795 = vmatprep.subr.bf16.mxu0 0
    %796 = vmatpush1.bf16.xpose.msra.mxu0 0
    %797 = vmatprep.subr.bf16.mxu0 0
    %798 = vmatpush1.bf16.xpose.msra.mxu0 0
    %799 = vmatprep.subr.bf16.mxu0 0
    %800 = vmatpush1.bf16.xpose.msra.mxu0 0
    %801 = vmatprep.subr.bf16.mxu0 0
    %802 = vmatpush1.bf16.xpose.msra.mxu0 0
    %803 = vmatprep.subr.bf16.mxu0 0
    %804 = vmatpush1.bf16.xpose.msra.mxu0 0
    %805 = vmatprep.mubr.bf16.mxu0 0
    %806 = vmatmul.mubr.bf16.gmra.mrb[0].mxu0 %v768
    %v807 = vpop.f32.mrb[0].mxu0
    %v808 = vadd.f32 0.0, %v807
    %v809 = vpop.f32.mrb[0].mxu0
    %v810 = vpop.f32.mrb[0].mxu0
    %v811 = vpop.f32.mrb[0].mxu0
    %812 = vdwg.mxu0
    %v813 = vsel %vm388, %v762, -inf
    %814 = vmax.xlane.f32.xlu0 %v813
    %v815 = vpop.xlane.xlu0 %814
    %v816 = vsel %vm388, %v808, -inf
    %817 = vmax.xlane.f32.xlu0 %v816
    %v818 = vpop.xlane.xlu0 %817
    %v819 = vsub.f32 %v762, %v815
    %v820 = vsub.f32 %v808, %v818
    %v821 = vmul.f32 %v819, 1.442695
    %v822 = vpow.pop %v821
    %v823 = vmul.f32 %v820, 1.442695
    %v824 = vpow.pop %v823
    %v825 = vsel %vm388, %v822, 0.0
    %826 = vadd.xlane.f32.xlu0 %v825
    %v827 = vpop.xlane.xlu0 %826
    %v828 = vsel %vm388, %v824, 0.0
    %829 = vadd.xlane.f32.xlu0 %v828
    %v830 = vpop.xlane.xlu0 %829
    %v831 = vrcp.pop %v827
    %v832 = vrcp.pop %v830
    %v833 = vmul.f32 %v822, %v831
    %v834 = vmul.f32 %v824, %v832
    %v835 = vpack.c.bf16 %v833, %v833
    %v836 = vpack.c.bf16 %v834, %v834
    %v838 = vsel %vm388, %v835, 0
    %840 = vmatprep.subr.bf16.mxu0 0
    %841 = vmatpush1.bf16.msra.mxu0 %v719
    %842 = vmatprep.subr.bf16.mxu0 0
    %843 = vmatpush1.bf16.msra.mxu0 0
    %844 = vmatprep.subr.bf16.mxu0 0
    %845 = vmatpush1.bf16.msra.mxu0 0
    %846 = vmatprep.subr.bf16.mxu0 0
    %847 = vmatpush1.bf16.msra.mxu0 0
    %848 = vmatprep.subr.bf16.mxu0 0
    %849 = vmatpush1.bf16.msra.mxu0 0
    %850 = vmatprep.subr.bf16.mxu0 0
    %851 = vmatpush1.bf16.msra.mxu0 0
    %852 = vmatprep.subr.bf16.mxu0 0
    %853 = vmatpush1.bf16.msra.mxu0 0
    %854 = vmatprep.subr.bf16.mxu0 0
    %855 = vmatpush1.bf16.msra.mxu0 0
    %856 = vmatprep.subr.bf16.mxu0 0
    %857 = vmatpush1.bf16.msra.mxu0 0
    %858 = vmatprep.subr.bf16.mxu0 0
    %859 = vmatpush1.bf16.msra.mxu0 0
    %860 = vmatprep.subr.bf16.mxu0 0
    %861 = vmatpush1.bf16.msra.mxu0 0
    %862 = vmatprep.subr.bf16.mxu0 0
    %863 = vmatpush1.bf16.msra.mxu0 0
    %864 = vmatprep.subr.bf16.mxu0 0
    %865 = vmatpush1.bf16.msra.mxu0 0
    %866 = vmatprep.subr.bf16.mxu0 0
    %867 = vmatpush1.bf16.msra.mxu0 0
    %868 = vmatprep.subr.bf16.mxu0 0
    %869 = vmatpush1.bf16.msra.mxu0 0
    %870 = vmatprep.subr.bf16.mxu0 0
    %871 = vmatpush1.bf16.msra.mxu0 0
    %872 = vmatprep.mubr.bf16.mxu0 0
    %873 = vmatmul.mubr.bf16.gmra.mrb[0].mxu0 %v838
    %v874 = vpop.f32.mrb[0].mxu0
    %v875 = vadd.f32 0.0, %v874
    %v876 = vpop.f32.mrb[0].mxu0
    %v877 = vpop.f32.mrb[0].mxu0
    %v878 = vpop.f32.mrb[0].mxu0
    %879 = vdwg.mxu0
    %v881 = vsel %vm388, %v836, 0
    %883 = vmatprep.subr.bf16.mxu0 0
    %884 = vmatpush1.bf16.msra.mxu0 %v720
    %885 = vmatprep.subr.bf16.mxu0 0
    %886 = vmatpush1.bf16.msra.mxu0 0
    %887 = vmatprep.subr.bf16.mxu0 0
    %888 = vmatpush1.bf16.msra.mxu0 0
    %889 = vmatprep.subr.bf16.mxu0 0
    %890 = vmatpush1.bf16.msra.mxu0 0
    %891 = vmatprep.subr.bf16.mxu0 0
    %892 = vmatpush1.bf16.msra.mxu0 0
    %893 = vmatprep.subr.bf16.mxu0 0
    %894 = vmatpush1.bf16.msra.mxu0 0
    %895 = vmatprep.subr.bf16.mxu0 0
    %896 = vmatpush1.bf16.msra.mxu0 0
    %897 = vmatprep.subr.bf16.mxu0 0
    %898 = vmatpush1.bf16.msra.mxu0 0
    %899 = vmatprep.subr.bf16.mxu0 0
    %900 = vmatpush1.bf16.msra.mxu0 0
    %901 = vmatprep.subr.bf16.mxu0 0
    %902 = vmatpush1.bf16.msra.mxu0 0
    %903 = vmatprep.subr.bf16.mxu0 0
    %904 = vmatpush1.bf16.msra.mxu0 0
    %905 = vmatprep.subr.bf16.mxu0 0
    %906 = vmatpush1.bf16.msra.mxu0 0
    %907 = vmatprep.subr.bf16.mxu0 0
    %908 = vmatpush1.bf16.msra.mxu0 0
    %909 = vmatprep.subr.bf16.mxu0 0
    %910 = vmatpush1.bf16.msra.mxu0 0
    %911 = vmatprep.subr.bf16.mxu0 0
    %912 = vmatpush1.bf16.msra.mxu0 0
    %913 = vmatprep.subr.bf16.mxu0 0
    %914 = vmatpush1.bf16.msra.mxu0 0
    %915 = vmatprep.mubr.bf16.mxu0 0
    %916 = vmatmul.mubr.bf16.gmra.mrb[0].mxu0 %v881
    %v917 = vpop.f32.mrb[0].mxu0
    %v918 = vadd.f32 0.0, %v917
    %v919 = vpop.f32.mrb[0].mxu0
    %v920 = vpop.f32.mrb[0].mxu0
    %v921 = vpop.f32.mrb[0].mxu0
    %922 = vdwg.mxu0
    %v923 = vpack.c.bf16 %v918, %v875
    %v928 = vunpack.c.l.b16 %v520
    %v929 = vunpack.c.l.b16 %v521
    %v930 = vunpack.c.l.b16 %v522
    %v931 = vunpack.c.l.b16 %v523
    %v932 = vpack.c.b16 %v929, %v928
    %v933 = vpack.c.b16 %v931, %v930
    %v937 = vsel %vm169, %v923, 0
    %939 = vmatprep.subr.bf16.mxu0 0
    %940 = vmatpush1.bf16.msra.mxu0 %v932
    %941 = vmatprep.subr.bf16.mxu0 0
    %942 = vmatpush1.bf16.msra.mxu0 %v933
    %943 = vmatprep.subr.bf16.mxu0 0
    %944 = vmatpush1.bf16.msra.mxu0 0
    %945 = vmatprep.subr.bf16.mxu0 0
    %946 = vmatpush1.bf16.msra.mxu0 0
    %947 = vmatprep.subr.bf16.mxu0 0
    %948 = vmatpush1.bf16.msra.mxu0 0
    %949 = vmatprep.subr.bf16.mxu0 0
    %950 = vmatpush1.bf16.msra.mxu0 0
    %951 = vmatprep.subr.bf16.mxu0 0
    %952 = vmatpush1.bf16.msra.mxu0 0
    %953 = vmatprep.subr.bf16.mxu0 0
    %954 = vmatpush1.bf16.msra.mxu0 0
    %955 = vmatprep.subr.bf16.mxu0 0
    %956 = vmatpush1.bf16.msra.mxu0 0
    %957 = vmatprep.subr.bf16.mxu0 0
    %958 = vmatpush1.bf16.msra.mxu0 0
    %959 = vmatprep.subr.bf16.mxu0 0
    %960 = vmatpush1.bf16.msra.mxu0 0
    %961 = vmatprep.subr.bf16.mxu0 0
    %962 = vmatpush1.bf16.msra.mxu0 0
    %963 = vmatprep.subr.bf16.mxu0 0
    %964 = vmatpush1.bf16.msra.mxu0 0
    %965 = vmatprep.subr.bf16.mxu0 0
    %966 = vmatpush1.bf16.msra.mxu0 0
    %967 = vmatprep.subr.bf16.mxu0 0
    %968 = vmatpush1.bf16.msra.mxu0 0
    %969 = vmatprep.subr.bf16.mxu0 0
    %970 = vmatpush1.bf16.msra.mxu0 0
    %971 = vmatprep.mubr.bf16.mxu0 0
    %972 = vmatmul.mubr.bf16.gmra.mrb[0].mxu0 %v937
    %v973 = vpop.f32.mrb[0].mxu0
    %v974 = vadd.f32 0.0, %v973
    %v975 = vpop.f32.mrb[0].mxu0
    %v976 = vpop.f32.mrb[0].mxu0
    %v977 = vadd.f32 0.0, %v976
    %v978 = vpop.f32.mrb[0].mxu0
    %979 = vdwg.mxu0
    %v984 = vunpack.c.l.b16 %v79
    %v985 = vunpack.c.l.b16 %v80
    %v986 = vunpack.c.l.b16 %v81
    %v987 = vunpack.c.l.b16 %v82
    %v988 = vpack.c.b16 %v985, %v984
    %v989 = vpack.c.b16 %v987, %v986
    %v993 = vsel %vm169, %v499, 0
    %995 = vmatprep.subr.bf16.mxu0 0
    %996 = vmatpush1.bf16.msra.mxu0 %v988
    %997 = vmatprep.subr.bf16.mxu0 0
    %998 = vmatpush1.bf16.msra.mxu0 %v989
    %999 = vmatprep.subr.bf16.mxu0 0
    %1000 = vmatpush1.bf16.msra.mxu0 0
    %1001 = vmatprep.subr.bf16.mxu0 0
    %1002 = vmatpush1.bf16.msra.mxu0 0
    %1003 = vmatprep.subr.bf16.mxu0 0
    %1004 = vmatpush1.bf16.msra.mxu0 0
    %1005 = vmatprep.subr.bf16.mxu0 0
    %1006 = vmatpush1.bf16.msra.mxu0 0
    %1007 = vmatprep.subr.bf16.mxu0 0
    %1008 = vmatpush1.bf16.msra.mxu0 0
    %1009 = vmatprep.subr.bf16.mxu0 0
    %1010 = vmatpush1.bf16.msra.mxu0 0
    %1011 = vmatprep.subr.bf16.mxu0 0
    %1012 = vmatpush1.bf16.msra.mxu0 0
    %1013 = vmatprep.subr.bf16.mxu0 0
    %1014 = vmatpush1.bf16.msra.mxu0 0
    %1015 = vmatprep.subr.bf16.mxu0 0
    %1016 = vmatpush1.bf16.msra.mxu0 0
    %1017 = vmatprep.subr.bf16.mxu0 0
    %1018 = vmatpush1.bf16.msra.mxu0 0
    %1019 = vmatprep.subr.bf16.mxu0 0
    %1020 = vmatpush1.bf16.msra.mxu0 0
    %1021 = vmatprep.subr.bf16.mxu0 0
    %1022 = vmatpush1.bf16.msra.mxu0 0
    %1023 = vmatprep.subr.bf16.mxu0 0
    %1024 = vmatpush1.bf16.msra.mxu0 0
    %1025 = vmatprep.subr.bf16.mxu0 0
    %1026 = vmatpush1.bf16.msra.mxu0 0
    %1027 = vmatprep.mubr.bf16.mxu0 0
    %1028 = vmatmul.mubr.bf16.gmra.mrb[0].mxu0 %v993
    %v1029 = vpop.f32.mrb[0].mxu0
    %v1030 = vadd.f32 %v974, %v1029
    %v1031 = vpop.f32.mrb[0].mxu0
    %v1032 = vpop.f32.mrb[0].mxu0
    %v1033 = vadd.f32 %v977, %v1032
    %v1034 = vpop.f32.mrb[0].mxu0
    %1035 = vdwg.mxu0
    %s1036 = scalar_lea.vmem %s2, 64
    %v1037 = vld [vmem:[%s1036] sm:$0xf]
    %v1038 = vld [vmem:[%s1036 + $0x4] sm:$0xf]
    %v1039 = vld [vmem:[%s1036 + $0x8] sm:$0xf]
    %v1040 = vld [vmem:[%s1036 + $0xc] sm:$0xf]
    %v1041 = vld [vmem:[%s1036 + $0x10] sm:$0xf]
    %v1042 = vld [vmem:[%s1036 + $0x14] sm:$0xf]
    %v1043 = vld [vmem:[%s1036 + $0x18] sm:$0xf]
    %v1044 = vld [vmem:[%s1036 + $0x1c] sm:$0xf]
    %s1045 = scalar_lea.vmem %s3, 32
    %v1046 = vld [vmem:[%s1045] sm:$0xf]
    %v1047 = vld [vmem:[%s1045 + $0x4] sm:$0xf]
    %v1048 = vld [vmem:[%s1045 + $0x8] sm:$0xf]
    %v1049 = vld [vmem:[%s1045 + $0xc] sm:$0xf]
    %s1050 = scalar_lea.vmem %s4, 32
    %v1051 = vld [vmem:[%s1050] sm:$0xf]
    %v1052 = vld [vmem:[%s1050 + $0x4] sm:$0xf]
    %v1053 = vld [vmem:[%s1050 + $0x8] sm:$0xf]
    %v1054 = vld [vmem:[%s1050 + $0xc] sm:$0xf]
    %s1055 = scalar_lea.vmem %s5, 32
    %v1056 = vld [vmem:[%s1055] sm:$0xf]
    %v1057 = vld [vmem:[%s1055 + $0x4] sm:$0xf]
    %v1058 = vld [vmem:[%s1055 + $0x8] sm:$0xf]
    %v1059 = vld [vmem:[%s1055 + $0xc] sm:$0xf]
    %v1068 = vunpack.c.l.b16 %v1037
    %v1069 = vunpack.c.l.b16 %v1038
    %v1070 = vunpack.c.l.b16 %v1039
    %v1071 = vunpack.c.l.b16 %v1040
    %v1072 = vunpack.c.l.b16 %v1041
    %v1073 = vunpack.c.l.b16 %v1042
    %v1074 = vunpack.c.l.b16 %v1043
    %v1075 = vunpack.c.l.b16 %v1044
    %v1076 = vpack.c.b16 %v1069, %v1068
    %v1077 = vpack.c.b16 %v1071, %v1070
    %v1078 = vpack.c.b16 %v1073, %v1072
    %v1079 = vpack.c.b16 %v1075, %v1074
    %1084 = vmatprep.subr.bf16.mxu0 0
    %1085 = vmatpush1.bf16.msra.mxu0 %v1076
    %1086 = vmatprep.subr.bf16.mxu0 0
    %1087 = vmatpush1.bf16.msra.mxu0 %v1077
    %1088 = vmatprep.subr.bf16.mxu0 0
    %1089 = vmatpush1.bf16.msra.mxu0 %v1078
    %1090 = vmatprep.subr.bf16.mxu0 0
    %1091 = vmatpush1.bf16.msra.mxu0 %v1079
    %1092 = vmatprep.subr.bf16.mxu0 0
    %1093 = vmatpush1.bf16.msra.mxu0 0
    %1094 = vmatprep.subr.bf16.mxu0 0
    %1095 = vmatpush1.bf16.msra.mxu0 0
    %1096 = vmatprep.subr.bf16.mxu0 0
    %1097 = vmatpush1.bf16.msra.mxu0 0
    %1098 = vmatprep.subr.bf16.mxu0 0
    %1099 = vmatpush1.bf16.msra.mxu0 0
    %1100 = vmatprep.subr.bf16.mxu0 0
    %1101 = vmatpush1.bf16.msra.mxu0 0
    %1102 = vmatprep.subr.bf16.mxu0 0
    %1103 = vmatpush1.bf16.msra.mxu0 0
    %1104 = vmatprep.subr.bf16.mxu0 0
    %1105 = vmatpush1.bf16.msra.mxu0 0
    %1106 = vmatprep.subr.bf16.mxu0 0
    %1107 = vmatpush1.bf16.msra.mxu0 0
    %1108 = vmatprep.subr.bf16.mxu0 0
    %1109 = vmatpush1.bf16.msra.mxu0 0
    %1110 = vmatprep.subr.bf16.mxu0 0
    %1111 = vmatpush1.bf16.msra.mxu0 0
    %1112 = vmatprep.subr.bf16.mxu0 0
    %1113 = vmatpush1.bf16.msra.mxu0 0
    %1114 = vmatprep.subr.bf16.mxu0 0
    %1115 = vmatpush1.bf16.msra.mxu0 0
    %1116 = vmatprep.mubr.bf16.mxu0 0
    %1117 = vmatmul.mubr.bf16.gmra.mrb[0].mxu0 %v114
    %v1118 = vpop.f32.mrb[0].mxu0
    %v1119 = vadd.f32 0.0, %v1118
    %v1120 = vpop.f32.mrb[0].mxu0
    %v1121 = vpop.f32.mrb[0].mxu0
    %v1122 = vadd.f32 0.0, %v1121
    %v1123 = vpop.f32.mrb[0].mxu0
    %1124 = vdwg.mxu0
    %v1129 = vunpack.c.l.b16 %v1046
    %v1130 = vunpack.c.l.b16 %v1047
    %v1131 = vunpack.c.l.b16 %v1048
    %v1132 = vunpack.c.l.b16 %v1049
    %v1133 = vpack.c.b16 %v1130, %v1129
    %v1134 = vpack.c.b16 %v1132, %v1131
    %1137 = vmatprep.subr.bf16.mxu0 0
    %1138 = vmatpush1.bf16.msra.mxu0 %v1133
    %1139 = vmatprep.subr.bf16.mxu0 0
    %1140 = vmatpush1.bf16.msra.mxu0 %v1134
    %1141 = vmatprep.subr.bf16.mxu0 0
    %1142 = vmatpush1.bf16.msra.mxu0 0
    %1143 = vmatprep.subr.bf16.mxu0 0
    %1144 = vmatpush1.bf16.msra.mxu0 0
    %1145 = vmatprep.subr.bf16.mxu0 0
    %1146 = vmatpush1.bf16.msra.mxu0 0
    %1147 = vmatprep.subr.bf16.mxu0 0
    %1148 = vmatpush1.bf16.msra.mxu0 0
    %1149 = vmatprep.subr.bf16.mxu0 0
    %1150 = vmatpush1.bf16.msra.mxu0 0
    %1151 = vmatprep.subr.bf16.mxu0 0
    %1152 = vmatpush1.bf16.msra.mxu0 0
    %1153 = vmatprep.subr.bf16.mxu0 0
    %1154 = vmatpush1.bf16.msra.mxu0 0
    %1155 = vmatprep.subr.bf16.mxu0 0
    %1156 = vmatpush1.bf16.msra.mxu0 0
    %1157 = vmatprep.subr.bf16.mxu0 0
    %1158 = vmatpush1.bf16.msra.mxu0 0
    %1159 = vmatprep.subr.bf16.mxu0 0
    %1160 = vmatpush1.bf16.msra.mxu0 0
    %1161 = vmatprep.subr.bf16.mxu0 0
    %1162 = vmatpush1.bf16.msra.mxu0 0
    %1163 = vmatprep.subr.bf16.mxu0 0
    %1164 = vmatpush1.bf16.msra.mxu0 0
    %1165 = vmatprep.subr.bf16.mxu0 0
    %1166 = vmatpush1.bf16.msra.mxu0 0
    %1167 = vmatprep.subr.bf16.mxu0 0
    %1168 = vmatpush1.bf16.msra.mxu0 0
    %1169 = vmatprep.mubr.bf16.mxu0 0
    %1170 = vmatmul.mubr.bf16.gmra.mrb[0].mxu0 %v171
    %v1171 = vpop.f32.mrb[0].mxu0
    %v1172 = vadd.f32 0.0, %v1171
    %v1173 = vpop.f32.mrb[0].mxu0
    %v1174 = vpop.f32.mrb[0].mxu0
    %v1175 = vadd.f32 0.0, %v1174
    %v1176 = vpop.f32.mrb[0].mxu0
    %1177 = vmatprep.mubr.bf16.mxu0 0
    %1178 = vmatmul.mubr.bf16.gmra.mrb[0].mxu0 %v174
    %v1179 = vpop.f32.mrb[0].mxu0
    %v1180 = vadd.f32 0.0, %v1179
    %v1181 = vpop.f32.mrb[0].mxu0
    %v1182 = vpop.f32.mrb[0].mxu0
    %v1183 = vadd.f32 0.0, %v1182
    %v1184 = vpop.f32.mrb[0].mxu0
    %1185 = vdwg.mxu0
    %v1190 = vunpack.c.l.b16 %v1051
    %v1191 = vunpack.c.l.b16 %v1052
    %v1192 = vunpack.c.l.b16 %v1053
    %v1193 = vunpack.c.l.b16 %v1054
    %v1194 = vpack.c.b16 %v1191, %v1190
    %v1195 = vpack.c.b16 %v1193, %v1192
    %1198 = vmatprep.subr.bf16.mxu0 0
    %1199 = vmatpush1.bf16.msra.mxu0 %v1194
    %1200 = vmatprep.subr.bf16.mxu0 0
    %1201 = vmatpush1.bf16.msra.mxu0 %v1195
    %1202 = vmatprep.subr.bf16.mxu0 0
    %1203 = vmatpush1.bf16.msra.mxu0 0
    %1204 = vmatprep.subr.bf16.mxu0 0
    %1205 = vmatpush1.bf16.msra.mxu0 0
    %1206 = vmatprep.subr.bf16.mxu0 0
    %1207 = vmatpush1.bf16.msra.mxu0 0
    %1208 = vmatprep.subr.bf16.mxu0 0
    %1209 = vmatpush1.bf16.msra.mxu0 0
    %1210 = vmatprep.subr.bf16.mxu0 0
    %1211 = vmatpush1.bf16.msra.mxu0 0
    %1212 = vmatprep.subr.bf16.mxu0 0
    %1213 = vmatpush1.bf16.msra.mxu0 0
    %1214 = vmatprep.subr.bf16.mxu0 0
    %1215 = vmatpush1.bf16.msra.mxu0 0
    %1216 = vmatprep.subr.bf16.mxu0 0
    %1217 = vmatpush1.bf16.msra.mxu0 0
    %1218 = vmatprep.subr.bf16.mxu0 0
    %1219 = vmatpush1.bf16.msra.mxu0 0
    %1220 = vmatprep.subr.bf16.mxu0 0
    %1221 = vmatpush1.bf16.msra.mxu0 0
    %1222 = vmatprep.subr.bf16.mxu0 0
    %1223 = vmatpush1.bf16.msra.mxu0 0
    %1224 = vmatprep.subr.bf16.mxu0 0
    %1225 = vmatpush1.bf16.msra.mxu0 0
    %1226 = vmatprep.subr.bf16.mxu0 0
    %1227 = vmatpush1.bf16.msra.mxu0 0
    %1228 = vmatprep.subr.bf16.mxu0 0
    %1229 = vmatpush1.bf16.msra.mxu0 0
    %1230 = vmatprep.mubr.bf16.mxu0 0
    %1231 = vmatmul.mubr.bf16.gmra.mrb[0].mxu0 %v171
    %v1232 = vpop.f32.mrb[0].mxu0
    %v1233 = vadd.f32 0.0, %v1232
    %v1234 = vpop.f32.mrb[0].mxu0
    %v1235 = vpop.f32.mrb[0].mxu0
    %v1236 = vadd.f32 0.0, %v1235
    %v1237 = vpop.f32.mrb[0].mxu0
    %1238 = vmatprep.mubr.bf16.mxu0 0
    %1239 = vmatmul.mubr.bf16.gmra.mrb[0].mxu0 %v174
    %v1240 = vpop.f32.mrb[0].mxu0
    %v1241 = vadd.f32 0.0, %v1240
    %v1242 = vpop.f32.mrb[0].mxu0
    %v1243 = vpop.f32.mrb[0].mxu0
    %v1244 = vadd.f32 0.0, %v1243
    %v1245 = vpop.f32.mrb[0].mxu0
    %1246 = vdwg.mxu0
    %v1247 = vpack.c.bf16 %v1122, %v1119
    %v1249 = vunpack.c.l.b16 %v1247
    %v1250 = vunpack.c.h.b16 %v1247
    %v1251 = vpack.c.b16 %v1249, %v1249
    %v1252 = vpack.c.b16 %v1250, %v1250
    %v1253 = vpack.c.bf16 %v1175, %v1172
    %v1254 = vpack.c.bf16 %v1183, %v1180
    %v1255 = vpack.c.bf16 %v1236, %v1233
    %v1256 = vpack.c.bf16 %v1244, %v1241
    %v1258 = vsel %vm169, %v1251, 0
    %v1261 = vsel %vm169, %v1253, 0
    %1263 = vmatprep.subr.bf16.mxu0 0
    %1264 = vmatpush1.bf16.xpose.msra.mxu0 %v1261
    %1265 = vmatprep.subr.bf16.mxu0 0
    %1266 = vmatpush1.bf16.xpose.msra.mxu0 0
    %1267 = vmatprep.subr.bf16.mxu0 0
    %1268 = vmatpush1.bf16.xpose.msra.mxu0 0
    %1269 = vmatprep.subr.bf16.mxu0 0
    %1270 = vmatpush1.bf16.xpose.msra.mxu0 0
    %1271 = vmatprep.subr.bf16.mxu0 0
    %1272 = vmatpush1.bf16.xpose.msra.mxu0 0
    %1273 = vmatprep.subr.bf16.mxu0 0
    %1274 = vmatpush1.bf16.xpose.msra.mxu0 0
    %1275 = vmatprep.subr.bf16.mxu0 0
    %1276 = vmatpush1.bf16.xpose.msra.mxu0 0
    %1277 = vmatprep.subr.bf16.mxu0 0
    %1278 = vmatpush1.bf16.xpose.msra.mxu0 0
    %1279 = vmatprep.subr.bf16.mxu0 0
    %1280 = vmatpush1.bf16.xpose.msra.mxu0 0
    %1281 = vmatprep.subr.bf16.mxu0 0
    %1282 = vmatpush1.bf16.xpose.msra.mxu0 0
    %1283 = vmatprep.subr.bf16.mxu0 0
    %1284 = vmatpush1.bf16.xpose.msra.mxu0 0
    %1285 = vmatprep.subr.bf16.mxu0 0
    %1286 = vmatpush1.bf16.xpose.msra.mxu0 0
    %1287 = vmatprep.subr.bf16.mxu0 0
    %1288 = vmatpush1.bf16.xpose.msra.mxu0 0
    %1289 = vmatprep.subr.bf16.mxu0 0
    %1290 = vmatpush1.bf16.xpose.msra.mxu0 0
    %1291 = vmatprep.subr.bf16.mxu0 0
    %1292 = vmatpush1.bf16.xpose.msra.mxu0 0
    %1293 = vmatprep.subr.bf16.mxu0 0
    %1294 = vmatpush1.bf16.xpose.msra.mxu0 0
    %1295 = vmatprep.mubr.bf16.mxu0 0
    %1296 = vmatmul.mubr.bf16.gmra.mrb[0].mxu0 %v1258
    %v1297 = vpop.f32.mrb[0].mxu0
    %v1298 = vadd.f32 0.0, %v1297
    %v1299 = vpop.f32.mrb[0].mxu0
    %v1300 = vpop.f32.mrb[0].mxu0
    %v1301 = vpop.f32.mrb[0].mxu0
    %1302 = vdwg.mxu0
    %v1304 = vsel %vm169, %v1252, 0
    %v1307 = vsel %vm169, %v1254, 0
    %1309 = vmatprep.subr.bf16.mxu0 0
    %1310 = vmatpush1.bf16.xpose.msra.mxu0 %v1307
    %1311 = vmatprep.subr.bf16.mxu0 0
    %1312 = vmatpush1.bf16.xpose.msra.mxu0 0
    %1313 = vmatprep.subr.bf16.mxu0 0
    %1314 = vmatpush1.bf16.xpose.msra.mxu0 0
    %1315 = vmatprep.subr.bf16.mxu0 0
    %1316 = vmatpush1.bf16.xpose.msra.mxu0 0
    %1317 = vmatprep.subr.bf16.mxu0 0
    %1318 = vmatpush1.bf16.xpose.msra.mxu0 0
    %1319 = vmatprep.subr.bf16.mxu0 0
    %1320 = vmatpush1.bf16.xpose.msra.mxu0 0
    %1321 = vmatprep.subr.bf16.mxu0 0
    %1322 = vmatpush1.bf16.xpose.msra.mxu0 0
    %1323 = vmatprep.subr.bf16.mxu0 0
    %1324 = vmatpush1.bf16.xpose.msra.mxu0 0
    %1325 = vmatprep.subr.bf16.mxu0 0
    %1326 = vmatpush1.bf16.xpose.msra.mxu0 0
    %1327 = vmatprep.subr.bf16.mxu0 0
    %1328 = vmatpush1.bf16.xpose.msra.mxu0 0
    %1329 = vmatprep.subr.bf16.mxu0 0
    %1330 = vmatpush1.bf16.xpose.msra.mxu0 0
    %1331 = vmatprep.subr.bf16.mxu0 0
    %1332 = vmatpush1.bf16.xpose.msra.mxu0 0
    %1333 = vmatprep.subr.bf16.mxu0 0
    %1334 = vmatpush1.bf16.xpose.msra.mxu0 0
    %1335 = vmatprep.subr.bf16.mxu0 0
    %1336 = vmatpush1.bf16.xpose.msra.mxu0 0
    %1337 = vmatprep.subr.bf16.mxu0 0
    %1338 = vmatpush1.bf16.xpose.msra.mxu0 0
    %1339 = vmatprep.subr.bf16.mxu0 0
    %1340 = vmatpush1.bf16.xpose.msra.mxu0 0
    %1341 = vmatprep.mubr.bf16.mxu0 0
    %1342 = vmatmul.mubr.bf16.gmra.mrb[0].mxu0 %v1304
    %v1343 = vpop.f32.mrb[0].mxu0
    %v1344 = vadd.f32 0.0, %v1343
    %v1345 = vpop.f32.mrb[0].mxu0
    %v1346 = vpop.f32.mrb[0].mxu0
    %v1347 = vpop.f32.mrb[0].mxu0
    %1348 = vdwg.mxu0
    %v1349 = vsel %vm388, %v1298, -inf
    %1350 = vmax.xlane.f32.xlu0 %v1349
    %v1351 = vpop.xlane.xlu0 %1350
    %v1352 = vsel %vm388, %v1344, -inf
    %1353 = vmax.xlane.f32.xlu0 %v1352
    %v1354 = vpop.xlane.xlu0 %1353
    %v1355 = vsub.f32 %v1298, %v1351
    %v1356 = vsub.f32 %v1344, %v1354
    %v1357 = vmul.f32 %v1355, 1.442695
    %v1358 = vpow.pop %v1357
    %v1359 = vmul.f32 %v1356, 1.442695
    %v1360 = vpow.pop %v1359
    %v1361 = vsel %vm388, %v1358, 0.0
    %1362 = vadd.xlane.f32.xlu0 %v1361
    %v1363 = vpop.xlane.xlu0 %1362
    %v1364 = vsel %vm388, %v1360, 0.0
    %1365 = vadd.xlane.f32.xlu0 %v1364
    %v1366 = vpop.xlane.xlu0 %1365
    %v1367 = vrcp.pop %v1363
    %v1368 = vrcp.pop %v1366
    %v1369 = vmul.f32 %v1358, %v1367
    %v1370 = vmul.f32 %v1360, %v1368
    %v1371 = vpack.c.bf16 %v1369, %v1369
    %v1372 = vpack.c.bf16 %v1370, %v1370
    %v1374 = vsel %vm388, %v1371, 0
    %1376 = vmatprep.subr.bf16.mxu0 0
    %1377 = vmatpush1.bf16.msra.mxu0 %v1255
    %1378 = vmatprep.subr.bf16.mxu0 0
    %1379 = vmatpush1.bf16.msra.mxu0 0
    %1380 = vmatprep.subr.bf16.mxu0 0
    %1381 = vmatpush1.bf16.msra.mxu0 0
    %1382 = vmatprep.subr.bf16.mxu0 0
    %1383 = vmatpush1.bf16.msra.mxu0 0
    %1384 = vmatprep.subr.bf16.mxu0 0
    %1385 = vmatpush1.bf16.msra.mxu0 0
    %1386 = vmatprep.subr.bf16.mxu0 0
    %1387 = vmatpush1.bf16.msra.mxu0 0
    %1388 = vmatprep.subr.bf16.mxu0 0
    %1389 = vmatpush1.bf16.msra.mxu0 0
    %1390 = vmatprep.subr.bf16.mxu0 0
    %1391 = vmatpush1.bf16.msra.mxu0 0
    %1392 = vmatprep.subr.bf16.mxu0 0
    %1393 = vmatpush1.bf16.msra.mxu0 0
    %1394 = vmatprep.subr.bf16.mxu0 0
    %1395 = vmatpush1.bf16.msra.mxu0 0
    %1396 = vmatprep.subr.bf16.mxu0 0
    %1397 = vmatpush1.bf16.msra.mxu0 0
    %1398 = vmatprep.subr.bf16.mxu0 0
    %1399 = vmatpush1.bf16.msra.mxu0 0
    %1400 = vmatprep.subr.bf16.mxu0 0
    %1401 = vmatpush1.bf16.msra.mxu0 0
    %1402 = vmatprep.subr.bf16.mxu0 0
    %1403 = vmatpush1.bf16.msra.mxu0 0
    %1404 = vmatprep.subr.bf16.mxu0 0
    %1405 = vmatpush1.bf16.msra.mxu0 0
    %1406 = vmatprep.subr.bf16.mxu0 0
    %1407 = vmatpush1.bf16.msra.mxu0 0
    %1408 = vmatprep.mubr.bf16.mxu0 0
    %1409 = vmatmul.mubr.bf16.gmra.mrb[0].mxu0 %v1374
    %v1410 = vpop.f32.mrb[0].mxu0
    %v1411 = vadd.f32 0.0, %v1410
    %v1412 = vpop.f32.mrb[0].mxu0
    %v1413 = vpop.f32.mrb[0].mxu0
    %v1414 = vpop.f32.mrb[0].mxu0
    %1415 = vdwg.mxu0
    %v1417 = vsel %vm388, %v1372, 0
    %1419 = vmatprep.subr.bf16.mxu0 0
    %1420 = vmatpush1.bf16.msra.mxu0 %v1256
    %1421 = vmatprep.subr.bf16.mxu0 0
    %1422 = vmatpush1.bf16.msra.mxu0 0
    %1423 = vmatprep.subr.bf16.mxu0 0
    %1424 = vmatpush1.bf16.msra.mxu0 0
    %1425 = vmatprep.subr.bf16.mxu0 0
    %1426 = vmatpush1.bf16.msra.mxu0 0
    %1427 = vmatprep.subr.bf16.mxu0 0
    %1428 = vmatpush1.bf16.msra.mxu0 0
    %1429 = vmatprep.subr.bf16.mxu0 0
    %1430 = vmatpush1.bf16.msra.mxu0 0
    %1431 = vmatprep.subr.bf16.mxu0 0
    %1432 = vmatpush1.bf16.msra.mxu0 0
    %1433 = vmatprep.subr.bf16.mxu0 0
    %1434 = vmatpush1.bf16.msra.mxu0 0
    %1435 = vmatprep.subr.bf16.mxu0 0
    %1436 = vmatpush1.bf16.msra.mxu0 0
    %1437 = vmatprep.subr.bf16.mxu0 0
    %1438 = vmatpush1.bf16.msra.mxu0 0
    %1439 = vmatprep.subr.bf16.mxu0 0
    %1440 = vmatpush1.bf16.msra.mxu0 0
    %1441 = vmatprep.subr.bf16.mxu0 0
    %1442 = vmatpush1.bf16.msra.mxu0 0
    %1443 = vmatprep.subr.bf16.mxu0 0
    %1444 = vmatpush1.bf16.msra.mxu0 0
    %1445 = vmatprep.subr.bf16.mxu0 0
    %1446 = vmatpush1.bf16.msra.mxu0 0
    %1447 = vmatprep.subr.bf16.mxu0 0
    %1448 = vmatpush1.bf16.msra.mxu0 0
    %1449 = vmatprep.subr.bf16.mxu0 0
    %1450 = vmatpush1.bf16.msra.mxu0 0
    %1451 = vmatprep.mubr.bf16.mxu0 0
    %1452 = vmatmul.mubr.bf16.gmra.mrb[0].mxu0 %v1417
    %v1453 = vpop.f32.mrb[0].mxu0
    %v1454 = vadd.f32 0.0, %v1453
    %v1455 = vpop.f32.mrb[0].mxu0
    %v1456 = vpop.f32.mrb[0].mxu0
    %v1457 = vpop.f32.mrb[0].mxu0
    %1458 = vdwg.mxu0
    %v1459 = vpack.c.bf16 %v1454, %v1411
    %v1464 = vunpack.c.l.b16 %v1056
    %v1465 = vunpack.c.l.b16 %v1057
    %v1466 = vunpack.c.l.b16 %v1058
    %v1467 = vunpack.c.l.b16 %v1059
    %v1468 = vpack.c.b16 %v1465, %v1464
    %v1469 = vpack.c.b16 %v1467, %v1466
    %v1473 = vsel %vm169, %v1459, 0
    %1475 = vmatprep.subr.bf16.mxu0 0
    %1476 = vmatpush1.bf16.msra.mxu0 %v1468
    %1477 = vmatprep.subr.bf16.mxu0 0
    %1478 = vmatpush1.bf16.msra.mxu0 %v1469
    %1479 = vmatprep.subr.bf16.mxu0 0
    %1480 = vmatpush1.bf16.msra.mxu0 0
    %1481 = vmatprep.subr.bf16.mxu0 0
    %1482 = vmatpush1.bf16.msra.mxu0 0
    %1483 = vmatprep.subr.bf16.mxu0 0
    %1484 = vmatpush1.bf16.msra.mxu0 0
    %1485 = vmatprep.subr.bf16.mxu0 0
    %1486 = vmatpush1.bf16.msra.mxu0 0
    %1487 = vmatprep.subr.bf16.mxu0 0
    %1488 = vmatpush1.bf16.msra.mxu0 0
    %1489 = vmatprep.subr.bf16.mxu0 0
    %1490 = vmatpush1.bf16.msra.mxu0 0
    %1491 = vmatprep.subr.bf16.mxu0 0
    %1492 = vmatpush1.bf16.msra.mxu0 0
    %1493 = vmatprep.subr.bf16.mxu0 0
    %1494 = vmatpush1.bf16.msra.mxu0 0
    %1495 = vmatprep.subr.bf16.mxu0 0
    %1496 = vmatpush1.bf16.msra.mxu0 0
    %1497 = vmatprep.subr.bf16.mxu0 0
    %1498 = vmatpush1.bf16.msra.mxu0 0
    %1499 = vmatprep.subr.bf16.mxu0 0
    %1500 = vmatpush1.bf16.msra.mxu0 0
    %1501 = vmatprep.subr.bf16.mxu0 0
    %1502 = vmatpush1.bf16.msra.mxu0 0
    %1503 = vmatprep.subr.bf16.mxu0 0
    %1504 = vmatpush1.bf16.msra.mxu0 0
    %1505 = vmatprep.subr.bf16.mxu0 0
    %1506 = vmatpush1.bf16.msra.mxu0 0
    %1507 = vmatprep.mubr.bf16.mxu0 0
    %1508 = vmatmul.mubr.bf16.gmra.mrb[0].mxu0 %v1473
    %v1509 = vpop.f32.mrb[0].mxu0
    %v1510 = vadd.f32 0.0, %v1509
    %v1511 = vpop.f32.mrb[0].mxu0
    %v1512 = vpop.f32.mrb[0].mxu0
    %v1513 = vadd.f32 0.0, %v1512
    %v1514 = vpop.f32.mrb[0].mxu0
    %1515 = vdwg.mxu0
    %v1516 = vadd.f32 %v1030, %v1510
    %v1517 = vadd.f32 %v1033, %v1513
    %s1518 = scalar_lea.vmem %s2, 96
    %v1519 = vld [vmem:[%s1518] sm:$0xf]
    %v1520 = vld [vmem:[%s1518 + $0x4] sm:$0xf]
    %v1521 = vld [vmem:[%s1518 + $0x8] sm:$0xf]
    %v1522 = vld [vmem:[%s1518 + $0xc] sm:$0xf]
    %v1523 = vld [vmem:[%s1518 + $0x10] sm:$0xf]
    %v1524 = vld [vmem:[%s1518 + $0x14] sm:$0xf]
    %v1525 = vld [vmem:[%s1518 + $0x18] sm:$0xf]
    %v1526 = vld [vmem:[%s1518 + $0x1c] sm:$0xf]
    %s1527 = scalar_lea.vmem %s3, 48
    %v1528 = vld [vmem:[%s1527] sm:$0xf]
    %v1529 = vld [vmem:[%s1527 + $0x4] sm:$0xf]
    %v1530 = vld [vmem:[%s1527 + $0x8] sm:$0xf]
    %v1531 = vld [vmem:[%s1527 + $0xc] sm:$0xf]
    %s1532 = scalar_lea.vmem %s4, 48
    %v1533 = vld [vmem:[%s1532] sm:$0xf]
    %v1534 = vld [vmem:[%s1532 + $0x4] sm:$0xf]
    %v1535 = vld [vmem:[%s1532 + $0x8] sm:$0xf]
    %v1536 = vld [vmem:[%s1532 + $0xc] sm:$0xf]
    %s1537 = scalar_lea.vmem %s5, 48
    %v1538 = vld [vmem:[%s1537] sm:$0xf]
    %v1539 = vld [vmem:[%s1537 + $0x4] sm:$0xf]
    %v1540 = vld [vmem:[%s1537 + $0x8] sm:$0xf]
    %v1541 = vld [vmem:[%s1537 + $0xc] sm:$0xf]
    %v1550 = vunpack.c.l.b16 %v1519
    %v1551 = vunpack.c.l.b16 %v1520
    %v1552 = vunpack.c.l.b16 %v1521
    %v1553 = vunpack.c.l.b16 %v1522
    %v1554 = vunpack.c.l.b16 %v1523
    %v1555 = vunpack.c.l.b16 %v1524
    %v1556 = vunpack.c.l.b16 %v1525
    %v1557 = vunpack.c.l.b16 %v1526
    %v1558 = vpack.c.b16 %v1551, %v1550
    %v1559 = vpack.c.b16 %v1553, %v1552
    %v1560 = vpack.c.b16 %v1555, %v1554
    %v1561 = vpack.c.b16 %v1557, %v1556
    %1566 = vmatprep.subr.bf16.mxu0 0
    %1567 = vmatpush1.bf16.msra.mxu0 %v1558
    %1568 = vmatprep.subr.bf16.mxu0 0
    %1569 = vmatpush1.bf16.msra.mxu0 %v1559
    %1570 = vmatprep.subr.bf16.mxu0 0
    %1571 = vmatpush1.bf16.msra.mxu0 %v1560
    %1572 = vmatprep.subr.bf16.mxu0 0
    %1573 = vmatpush1.bf16.msra.mxu0 %v1561
    %1574 = vmatprep.subr.bf16.mxu0 0
    %1575 = vmatpush1.bf16.msra.mxu0 0
    %1576 = vmatprep.subr.bf16.mxu0 0
    %1577 = vmatpush1.bf16.msra.mxu0 0
    %1578 = vmatprep.subr.bf16.mxu0 0
    %1579 = vmatpush1.bf16.msra.mxu0 0
    %1580 = vmatprep.subr.bf16.mxu0 0
    %1581 = vmatpush1.bf16.msra.mxu0 0
    %1582 = vmatprep.subr.bf16.mxu0 0
    %1583 = vmatpush1.bf16.msra.mxu0 0
    %1584 = vmatprep.subr.bf16.mxu0 0
    %1585 = vmatpush1.bf16.msra.mxu0 0
    %1586 = vmatprep.subr.bf16.mxu0 0
    %1587 = vmatpush1.bf16.msra.mxu0 0
    %1588 = vmatprep.subr.bf16.mxu0 0
    %1589 = vmatpush1.bf16.msra.mxu0 0
    %1590 = vmatprep.subr.bf16.mxu0 0
    %1591 = vmatpush1.bf16.msra.mxu0 0
    %1592 = vmatprep.subr.bf16.mxu0 0
    %1593 = vmatpush1.bf16.msra.mxu0 0
    %1594 = vmatprep.subr.bf16.mxu0 0
    %1595 = vmatpush1.bf16.msra.mxu0 0
    %1596 = vmatprep.subr.bf16.mxu0 0
    %1597 = vmatpush1.bf16.msra.mxu0 0
    %1598 = vmatprep.mubr.bf16.mxu0 0
    %1599 = vmatmul.mubr.bf16.gmra.mrb[0].mxu0 %v114
    %v1600 = vpop.f32.mrb[0].mxu0
    %v1601 = vadd.f32 0.0, %v1600
    %v1602 = vpop.f32.mrb[0].mxu0
    %v1603 = vpop.f32.mrb[0].mxu0
    %v1604 = vadd.f32 0.0, %v1603
    %v1605 = vpop.f32.mrb[0].mxu0
    %1606 = vdwg.mxu0
    %v1611 = vunpack.c.l.b16 %v1528
    %v1612 = vunpack.c.l.b16 %v1529
    %v1613 = vunpack.c.l.b16 %v1530
    %v1614 = vunpack.c.l.b16 %v1531
    %v1615 = vpack.c.b16 %v1612, %v1611
    %v1616 = vpack.c.b16 %v1614, %v1613
    %1619 = vmatprep.subr.bf16.mxu0 0
    %1620 = vmatpush1.bf16.msra.mxu0 %v1615
    %1621 = vmatprep.subr.bf16.mxu0 0
    %1622 = vmatpush1.bf16.msra.mxu0 %v1616
    %1623 = vmatprep.subr.bf16.mxu0 0
    %1624 = vmatpush1.bf16.msra.mxu0 0
    %1625 = vmatprep.subr.bf16.mxu0 0
    %1626 = vmatpush1.bf16.msra.mxu0 0
    %1627 = vmatprep.subr.bf16.mxu0 0
    %1628 = vmatpush1.bf16.msra.mxu0 0
    %1629 = vmatprep.subr.bf16.mxu0 0
    %1630 = vmatpush1.bf16.msra.mxu0 0
    %1631 = vmatprep.subr.bf16.mxu0 0
    %1632 = vmatpush1.bf16.msra.mxu0 0
    %1633 = vmatprep.subr.bf16.mxu0 0
    %1634 = vmatpush1.bf16.msra.mxu0 0
    %1635 = vmatprep.subr.bf16.mxu0 0
    %1636 = vmatpush1.bf16.msra.mxu0 0
    %1637 = vmatprep.subr.bf16.mxu0 0
    %1638 = vmatpush1.bf16.msra.mxu0 0
    %1639 = vmatprep.subr.bf16.mxu0 0
    %1640 = vmatpush1.bf16.msra.mxu0 0
    %1641 = vmatprep.subr.bf16.mxu0 0
    %1642 = vmatpush1.bf16.msra.mxu0 0
    %1643 = vmatprep.subr.bf16.mxu0 0
    %1644 = vmatpush1.bf16.msra.mxu0 0
    %1645 = vmatprep.subr.bf16.mxu0 0
    %1646 = vmatpush1.bf16.msra.mxu0 0
    %1647 = vmatprep.subr.bf16.mxu0 0
    %1648 = vmatpush1.bf16.msra.mxu0 0
    %1649 = vmatprep.subr.bf16.mxu0 0
    %1650 = vmatpush1.bf16.msra.mxu0 0
    %1651 = vmatprep.mubr.bf16.mxu0 0
    %1652 = vmatmul.mubr.bf16.gmra.mrb[0].mxu0 %v171
    %v1653 = vpop.f32.mrb[0].mxu0
    %v1654 = vadd.f32 0.0, %v1653
    %v1655 = vpop.f32.mrb[0].mxu0
    %v1656 = vpop.f32.mrb[0].mxu0
    %v1657 = vadd.f32 0.0, %v1656
    %v1658 = vpop.f32.mrb[0].mxu0
    %1659 = vmatprep.mubr.bf16.mxu0 0
    %1660 = vmatmul.mubr.bf16.gmra.mrb[0].mxu0 %v174
    %v1661 = vpop.f32.mrb[0].mxu0
    %v1662 = vadd.f32 0.0, %v1661
    %v1663 = vpop.f32.mrb[0].mxu0
    %v1664 = vpop.f32.mrb[0].mxu0
    %v1665 = vadd.f32 0.0, %v1664
    %v1666 = vpop.f32.mrb[0].mxu0
    %1667 = vdwg.mxu0
    %v1672 = vunpack.c.l.b16 %v1533
    %v1673 = vunpack.c.l.b16 %v1534
    %v1674 = vunpack.c.l.b16 %v1535
    %v1675 = vunpack.c.l.b16 %v1536
    %v1676 = vpack.c.b16 %v1673, %v1672
    %v1677 = vpack.c.b16 %v1675, %v1674
    %1680 = vmatprep.subr.bf16.mxu0 0
    %1681 = vmatpush1.bf16.msra.mxu0 %v1676
    %1682 = vmatprep.subr.bf16.mxu0 0
    %1683 = vmatpush1.bf16.msra.mxu0 %v1677
    %1684 = vmatprep.subr.bf16.mxu0 0
    %1685 = vmatpush1.bf16.msra.mxu0 0
    %1686 = vmatprep.subr.bf16.mxu0 0
    %1687 = vmatpush1.bf16.msra.mxu0 0
    %1688 = vmatprep.subr.bf16.mxu0 0
    %1689 = vmatpush1.bf16.msra.mxu0 0
    %1690 = vmatprep.subr.bf16.mxu0 0
    %1691 = vmatpush1.bf16.msra.mxu0 0
    %1692 = vmatprep.subr.bf16.mxu0 0
    %1693 = vmatpush1.bf16.msra.mxu0 0
    %1694 = vmatprep.subr.bf16.mxu0 0
    %1695 = vmatpush1.bf16.msra.mxu0 0
    %1696 = vmatprep.subr.bf16.mxu0 0
    %1697 = vmatpush1.bf16.msra.mxu0 0
    %1698 = vmatprep.subr.bf16.mxu0 0
    %1699 = vmatpush1.bf16.msra.mxu0 0
    %1700 = vmatprep.subr.bf16.mxu0 0
    %1701 = vmatpush1.bf16.msra.mxu0 0
    %1702 = vmatprep.subr.bf16.mxu0 0
    %1703 = vmatpush1.bf16.msra.mxu0 0
    %1704 = vmatprep.subr.bf16.mxu0 0
    %1705 = vmatpush1.bf16.msra.mxu0 0
    %1706 = vmatprep.subr.bf16.mxu0 0
    %1707 = vmatpush1.bf16.msra.mxu0 0
    %1708 = vmatprep.subr.bf16.mxu0 0
    %1709 = vmatpush1.bf16.msra.mxu0 0
    %1710 = vmatprep.subr.bf16.mxu0 0
    %1711 = vmatpush1.bf16.msra.mxu0 0
    %1712 = vmatprep.mubr.bf16.mxu0 0
    %1713 = vmatmul.mubr.bf16.gmra.mrb[0].mxu0 %v171
    %v1714 = vpop.f32.mrb[0].mxu0
    %v1715 = vadd.f32 0.0, %v1714
    %v1716 = vpop.f32.mrb[0].mxu0
    %v1717 = vpop.f32.mrb[0].mxu0
    %v1718 = vadd.f32 0.0, %v1717
    %v1719 = vpop.f32.mrb[0].mxu0
    %1720 = vmatprep.mubr.bf16.mxu0 0
    %1721 = vmatmul.mubr.bf16.gmra.mrb[0].mxu0 %v174
    %v1722 = vpop.f32.mrb[0].mxu0
    %v1723 = vadd.f32 0.0, %v1722
    %v1724 = vpop.f32.mrb[0].mxu0
    %v1725 = vpop.f32.mrb[0].mxu0
    %v1726 = vadd.f32 0.0, %v1725
    %v1727 = vpop.f32.mrb[0].mxu0
    %1728 = vdwg.mxu0
    %v1729 = vpack.c.bf16 %v1604, %v1601
    %v1731 = vunpack.c.l.b16 %v1729
    %v1732 = vunpack.c.h.b16 %v1729
    %v1733 = vpack.c.b16 %v1731, %v1731
    %v1734 = vpack.c.b16 %v1732, %v1732
    %v1735 = vpack.c.bf16 %v1657, %v1654
    %v1736 = vpack.c.bf16 %v1665, %v1662
    %v1737 = vpack.c.bf16 %v1718, %v1715
    %v1738 = vpack.c.bf16 %v1726, %v1723
    %v1740 = vsel %vm169, %v1733, 0
    %v1743 = vsel %vm169, %v1735, 0
    %1745 = vmatprep.subr.bf16.mxu0 0
    %1746 = vmatpush1.bf16.xpose.msra.mxu0 %v1743
    %1747 = vmatprep.subr.bf16.mxu0 0
    %1748 = vmatpush1.bf16.xpose.msra.mxu0 0
    %1749 = vmatprep.subr.bf16.mxu0 0
    %1750 = vmatpush1.bf16.xpose.msra.mxu0 0
    %1751 = vmatprep.subr.bf16.mxu0 0
    %1752 = vmatpush1.bf16.xpose.msra.mxu0 0
    %1753 = vmatprep.subr.bf16.mxu0 0
    %1754 = vmatpush1.bf16.xpose.msra.mxu0 0
    %1755 = vmatprep.subr.bf16.mxu0 0
    %1756 = vmatpush1.bf16.xpose.msra.mxu0 0
    %1757 = vmatprep.subr.bf16.mxu0 0
    %1758 = vmatpush1.bf16.xpose.msra.mxu0 0
    %1759 = vmatprep.subr.bf16.mxu0 0
    %1760 = vmatpush1.bf16.xpose.msra.mxu0 0
    %1761 = vmatprep.subr.bf16.mxu0 0
    %1762 = vmatpush1.bf16.xpose.msra.mxu0 0
    %1763 = vmatprep.subr.bf16.mxu0 0
    %1764 = vmatpush1.bf16.xpose.msra.mxu0 0
    %1765 = vmatprep.subr.bf16.mxu0 0
    %1766 = vmatpush1.bf16.xpose.msra.mxu0 0
    %1767 = vmatprep.subr.bf16.mxu0 0
    %1768 = vmatpush1.bf16.xpose.msra.mxu0 0
    %1769 = vmatprep.subr.bf16.mxu0 0
    %1770 = vmatpush1.bf16.xpose.msra.mxu0 0
    %1771 = vmatprep.subr.bf16.mxu0 0
    %1772 = vmatpush1.bf16.xpose.msra.mxu0 0
    %1773 = vmatprep.subr.bf16.mxu0 0
    %1774 = vmatpush1.bf16.xpose.msra.mxu0 0
    %1775 = vmatprep.subr.bf16.mxu0 0
    %1776 = vmatpush1.bf16.xpose.msra.mxu0 0
    %1777 = vmatprep.mubr.bf16.mxu0 0
    %1778 = vmatmul.mubr.bf16.gmra.mrb[0].mxu0 %v1740
    %v1779 = vpop.f32.mrb[0].mxu0
    %v1780 = vadd.f32 0.0, %v1779
    %v1781 = vpop.f32.mrb[0].mxu0
    %v1782 = vpop.f32.mrb[0].mxu0
    %v1783 = vpop.f32.mrb[0].mxu0
    %1784 = vdwg.mxu0
    %v1786 = vsel %vm169, %v1734, 0
    %v1789 = vsel %vm169, %v1736, 0
    %1791 = vmatprep.subr.bf16.mxu0 0
    %1792 = vmatpush1.bf16.xpose.msra.mxu0 %v1789
    %1793 = vmatprep.subr.bf16.mxu0 0
    %1794 = vmatpush1.bf16.xpose.msra.mxu0 0
    %1795 = vmatprep.subr.bf16.mxu0 0
    %1796 = vmatpush1.bf16.xpose.msra.mxu0 0
    %1797 = vmatprep.subr.bf16.mxu0 0
    %1798 = vmatpush1.bf16.xpose.msra.mxu0 0
    %1799 = vmatprep.subr.bf16.mxu0 0
    %1800 = vmatpush1.bf16.xpose.msra.mxu0 0
    %1801 = vmatprep.subr.bf16.mxu0 0
    %1802 = vmatpush1.bf16.xpose.msra.mxu0 0
    %1803 = vmatprep.subr.bf16.mxu0 0
    %1804 = vmatpush1.bf16.xpose.msra.mxu0 0
    %1805 = vmatprep.subr.bf16.mxu0 0
    %1806 = vmatpush1.bf16.xpose.msra.mxu0 0
    %1807 = vmatprep.subr.bf16.mxu0 0
    %1808 = vmatpush1.bf16.xpose.msra.mxu0 0
    %1809 = vmatprep.subr.bf16.mxu0 0
    %1810 = vmatpush1.bf16.xpose.msra.mxu0 0
    %1811 = vmatprep.subr.bf16.mxu0 0
    %1812 = vmatpush1.bf16.xpose.msra.mxu0 0
    %1813 = vmatprep.subr.bf16.mxu0 0
    %1814 = vmatpush1.bf16.xpose.msra.mxu0 0
    %1815 = vmatprep.subr.bf16.mxu0 0
    %1816 = vmatpush1.bf16.xpose.msra.mxu0 0
    %1817 = vmatprep.subr.bf16.mxu0 0
    %1818 = vmatpush1.bf16.xpose.msra.mxu0 0
    %1819 = vmatprep.subr.bf16.mxu0 0
    %1820 = vmatpush1.bf16.xpose.msra.mxu0 0
    %1821 = vmatprep.subr.bf16.mxu0 0
    %1822 = vmatpush1.bf16.xpose.msra.mxu0 0
    %1823 = vmatprep.mubr.bf16.mxu0 0
    %1824 = vmatmul.mubr.bf16.gmra.mrb[0].mxu0 %v1786
    %v1825 = vpop.f32.mrb[0].mxu0
    %v1826 = vadd.f32 0.0, %v1825
    %v1827 = vpop.f32.mrb[0].mxu0
    %v1828 = vpop.f32.mrb[0].mxu0
    %v1829 = vpop.f32.mrb[0].mxu0
    %1830 = vdwg.mxu0
    %v1831 = vsel %vm388, %v1780, -inf
    %1832 = vmax.xlane.f32.xlu0 %v1831
    %v1833 = vpop.xlane.xlu0 %1832
    %v1834 = vsel %vm388, %v1826, -inf
    %1835 = vmax.xlane.f32.xlu0 %v1834
    %v1836 = vpop.xlane.xlu0 %1835
    %v1837 = vsub.f32 %v1780, %v1833
    %v1838 = vsub.f32 %v1826, %v1836
    %v1839 = vmul.f32 %v1837, 1.442695
    %v1840 = vpow.pop %v1839
    %v1841 = vmul.f32 %v1838, 1.442695
    %v1842 = vpow.pop %v1841
    %v1843 = vsel %vm388, %v1840, 0.0
    %1844 = vadd.xlane.f32.xlu0 %v1843
    %v1845 = vpop.xlane.xlu0 %1844
    %v1846 = vsel %vm388, %v1842, 0.0
    %1847 = vadd.xlane.f32.xlu0 %v1846
    %v1848 = vpop.xlane.xlu0 %1847
    %v1849 = vrcp.pop %v1845
    %v1850 = vrcp.pop %v1848
    %v1851 = vmul.f32 %v1840, %v1849
    %v1852 = vmul.f32 %v1842, %v1850
    %v1853 = vpack.c.bf16 %v1851, %v1851
    %v1854 = vpack.c.bf16 %v1852, %v1852
    %v1856 = vsel %vm388, %v1853, 0
    %1858 = vmatprep.subr.bf16.mxu0 0
    %1859 = vmatpush1.bf16.msra.mxu0 %v1737
    %1860 = vmatprep.subr.bf16.mxu0 0
    %1861 = vmatpush1.bf16.msra.mxu0 0
    %1862 = vmatprep.subr.bf16.mxu0 0
    %1863 = vmatpush1.bf16.msra.mxu0 0
    %1864 = vmatprep.subr.bf16.mxu0 0
    %1865 = vmatpush1.bf16.msra.mxu0 0
    %1866 = vmatprep.subr.bf16.mxu0 0
    %1867 = vmatpush1.bf16.msra.mxu0 0
    %1868 = vmatprep.subr.bf16.mxu0 0
    %1869 = vmatpush1.bf16.msra.mxu0 0
    %1870 = vmatprep.subr.bf16.mxu0 0
    %1871 = vmatpush1.bf16.msra.mxu0 0
    %1872 = vmatprep.subr.bf16.mxu0 0
    %1873 = vmatpush1.bf16.msra.mxu0 0
    %1874 = vmatprep.subr.bf16.mxu0 0
    %1875 = vmatpush1.bf16.msra.mxu0 0
    %1876 = vmatprep.subr.bf16.mxu0 0
    %1877 = vmatpush1.bf16.msra.mxu0 0
    %1878 = vmatprep.subr.bf16.mxu0 0
    %1879 = vmatpush1.bf16.msra.mxu0 0
    %1880 = vmatprep.subr.bf16.mxu0 0
    %1881 = vmatpush1.bf16.msra.mxu0 0
    %1882 = vmatprep.subr.bf16.mxu0 0
    %1883 = vmatpush1.bf16.msra.mxu0 0
    %1884 = vmatprep.subr.bf16.mxu0 0
    %1885 = vmatpush1.bf16.msra.mxu0 0
    %1886 = vmatprep.subr.bf16.mxu0 0
    %1887 = vmatpush1.bf16.msra.mxu0 0
    %1888 = vmatprep.subr.bf16.mxu0 0
    %1889 = vmatpush1.bf16.msra.mxu0 0
    %1890 = vmatprep.mubr.bf16.mxu0 0
    %1891 = vmatmul.mubr.bf16.gmra.mrb[0].mxu0 %v1856
    %v1892 = vpop.f32.mrb[0].mxu0
    %v1893 = vadd.f32 0.0, %v1892
    %v1894 = vpop.f32.mrb[0].mxu0
    %v1895 = vpop.f32.mrb[0].mxu0
    %v1896 = vpop.f32.mrb[0].mxu0
    %1897 = vdwg.mxu0
    %v1899 = vsel %vm388, %v1854, 0
    %1901 = vmatprep.subr.bf16.mxu0 0
    %1902 = vmatpush1.bf16.msra.mxu0 %v1738
    %1903 = vmatprep.subr.bf16.mxu0 0
    %1904 = vmatpush1.bf16.msra.mxu0 0
    %1905 = vmatprep.subr.bf16.mxu0 0
    %1906 = vmatpush1.bf16.msra.mxu0 0
    %1907 = vmatprep.subr.bf16.mxu0 0
    %1908 = vmatpush1.bf16.msra.mxu0 0
    %1909 = vmatprep.subr.bf16.mxu0 0
    %1910 = vmatpush1.bf16.msra.mxu0 0
    %1911 = vmatprep.subr.bf16.mxu0 0
    %1912 = vmatpush1.bf16.msra.mxu0 0
    %1913 = vmatprep.subr.bf16.mxu0 0
    %1914 = vmatpush1.bf16.msra.mxu0 0
    %1915 = vmatprep.subr.bf16.mxu0 0
    %1916 = vmatpush1.bf16.msra.mxu0 0
    %1917 = vmatprep.subr.bf16.mxu0 0
    %1918 = vmatpush1.bf16.msra.mxu0 0
    %1919 = vmatprep.subr.bf16.mxu0 0
    %1920 = vmatpush1.bf16.msra.mxu0 0
    %1921 = vmatprep.subr.bf16.mxu0 0
    %1922 = vmatpush1.bf16.msra.mxu0 0
    %1923 = vmatprep.subr.bf16.mxu0 0
    %1924 = vmatpush1.bf16.msra.mxu0 0
    %1925 = vmatprep.subr.bf16.mxu0 0
    %1926 = vmatpush1.bf16.msra.mxu0 0
    %1927 = vmatprep.subr.bf16.mxu0 0
    %1928 = vmatpush1.bf16.msra.mxu0 0
    %1929 = vmatprep.subr.bf16.mxu0 0
    %1930 = vmatpush1.bf16.msra.mxu0 0
    %1931 = vmatprep.subr.bf16.mxu0 0
    %1932 = vmatpush1.bf16.msra.mxu0 0
    %1933 = vmatprep.mubr.bf16.mxu0 0
    %1934 = vmatmul.mubr.bf16.gmra.mrb[0].mxu0 %v1899
    %v1935 = vpop.f32.mrb[0].mxu0
    %v1936 = vadd.f32 0.0, %v1935
    %v1937 = vpop.f32.mrb[0].mxu0
    %v1938 = vpop.f32.mrb[0].mxu0
    %v1939 = vpop.f32.mrb[0].mxu0
    %1940 = vdwg.mxu0
    %v1941 = vpack.c.bf16 %v1936, %v1893
    %v1946 = vunpack.c.l.b16 %v1538
    %v1947 = vunpack.c.l.b16 %v1539
    %v1948 = vunpack.c.l.b16 %v1540
    %v1949 = vunpack.c.l.b16 %v1541
    %v1950 = vpack.c.b16 %v1947, %v1946
    %v1951 = vpack.c.b16 %v1949, %v1948
    %v1955 = vsel %vm169, %v1941, 0
    %1957 = vmatprep.subr.bf16.mxu0 0
    %1958 = vmatpush1.bf16.msra.mxu0 %v1950
    %1959 = vmatprep.subr.bf16.mxu0 0
    %1960 = vmatpush1.bf16.msra.mxu0 %v1951
    %1961 = vmatprep.subr.bf16.mxu0 0
    %1962 = vmatpush1.bf16.msra.mxu0 0
    %1963 = vmatprep.subr.bf16.mxu0 0
    %1964 = vmatpush1.bf16.msra.mxu0 0
    %1965 = vmatprep.subr.bf16.mxu0 0
    %1966 = vmatpush1.bf16.msra.mxu0 0
    %1967 = vmatprep.subr.bf16.mxu0 0
    %1968 = vmatpush1.bf16.msra.mxu0 0
    %1969 = vmatprep.subr.bf16.mxu0 0
    %1970 = vmatpush1.bf16.msra.mxu0 0
    %1971 = vmatprep.subr.bf16.mxu0 0
    %1972 = vmatpush1.bf16.msra.mxu0 0
    %1973 = vmatprep.subr.bf16.mxu0 0
    %1974 = vmatpush1.bf16.msra.mxu0 0
    %1975 = vmatprep.subr.bf16.mxu0 0
    %1976 = vmatpush1.bf16.msra.mxu0 0
    %1977 = vmatprep.subr.bf16.mxu0 0
    %1978 = vmatpush1.bf16.msra.mxu0 0
    %1979 = vmatprep.subr.bf16.mxu0 0
    %1980 = vmatpush1.bf16.msra.mxu0 0
    %1981 = vmatprep.subr.bf16.mxu0 0
    %1982 = vmatpush1.bf16.msra.mxu0 0
    %1983 = vmatprep.subr.bf16.mxu0 0
    %1984 = vmatpush1.bf16.msra.mxu0 0
    %1985 = vmatprep.subr.bf16.mxu0 0
    %1986 = vmatpush1.bf16.msra.mxu0 0
    %1987 = vmatprep.subr.bf16.mxu0 0
    %1988 = vmatpush1.bf16.msra.mxu0 0
    %1989 = vmatprep.mubr.bf16.mxu0 0
    %1990 = vmatmul.mubr.bf16.gmra.mrb[0].mxu0 %v1955
    %v1991 = vpop.f32.mrb[0].mxu0
    %v1992 = vadd.f32 0.0, %v1991
    %v1993 = vpop.f32.mrb[0].mxu0
    %v1994 = vpop.f32.mrb[0].mxu0
    %v1995 = vadd.f32 0.0, %v1994
    %v1996 = vpop.f32.mrb[0].mxu0
    %1997 = vdwg.mxu0
    %v1998 = vadd.f32 %v1516, %v1992
    %v1999 = vadd.f32 %v1517, %v1995
    %2000 = vst.msk [vmem:[#allocation7] sm:$0xff] %vm169, %v1998
    %2001 = vst.msk [vmem:[#allocation7 + $0x8] sm:$0xff] %vm169, %v1999
    // Predicated region
    $region34: #{tpu_custom_call.1} parent=1 // pred_check
      _
    $region35: #{tpu_custom_call.1} parent=1 // pred_check_branch
      %2003 = sbr.rel (0) target = $region37
    $region36: #{tpu_custom_call.1} parent=1 // pred_region
      %s2005 = ssub.s32 256, 256
      %2006 = vsyncadd [#allocation4], %s2005
      %s2007 = sshll.u32 [#allocation7], 4
      %s2008 = int_to_ptr.vmem [resolvable:$true] %s2007
      %2013 = dma.vmem_to_hbm [thread:$0]  %s2008, 256, %s6, [#allocation4], 128, 128, 8
    $region37: #{tpu_custom_call.1} parent=1 // pred_fallthru
      _
    // Predicated region
    $region38: #{tpu_custom_call.1} parent=1 // pred_check
      _
    $region39: #{tpu_custom_call.1} parent=1 // pred_check_branch
      %2015 = sbr.rel (0) target = $region41
    $region40: #{tpu_custom_call.1} parent=1 // pred_region
      %2016 = dma.done [#allocation4], 256
    $region41: #{tpu_custom_call.1} parent=1 // pred_fallthru
      _
    %2017 = vsyncpa [#allocation3], 1
    %2018 = vsyncpa [#allocation6], 1
    %2019 = vsyncpa [#allocation4], 1

</llo_original>
